<compile_context>
chip_gen: v7x
topology: tpu7x:2x2x1
jax: 0.10.0
libtpu: 0.0.40
codegen_flags: <defaults>
</compile_context>

<pallas_src>
import jax
import jax.numpy as jnp
from jax import lax
from jax.experimental import pallas as pl
from jax.experimental.pallas import tpu as pltpu

VMEM = pl.BlockSpec(memory_space=pltpu.MemorySpace.VMEM)

# ----------------------------- small config ---------------------------------
OBS_LEN = 8
PRED_LEN = 4
BATCH = 8            # total pedestrians across all sequences
EMB = 16             # embedding_dim
ENC_H = 16           # encoder_h_dim
DEC_H = 32           # decoder_h_dim
MLP_DIM = 32         # mlp_dim of mlp_decoder_context
BOTTLENECK = 32      # bottleneck_dim (pooling output width)
POOL_MLP = 32        # hidden width of the pooling MLP
OUT_PAD = 128        # lane-dense output width; cols 0:2 hold (dx, dy)
# noise_dim=(0,) -> self.noise_dim=None -> add_noise is identity (no RNG used).

# -------------- packed parameter slab layout (static row offsets) ------------
# 32-lane weight slab
W32_POOL_FW = 0                               # 2 real rows, padded to 8
W32_POOL_W1H = 8
W32_POOL_W2 = W32_POOL_W1H + ENC_H
W32_CTX_W1H = W32_POOL_W2 + POOL_MLP
W32_CTX_W1P = W32_CTX_W1H + ENC_H
W32_CTX_W2 = W32_CTX_W1P + BOTTLENECK
W32_ROWS = W32_CTX_W2 + MLP_DIM
# 64-lane weight slab
W64_ENC_WXG = 0                               # 2 real rows, padded to 8
W64_ENC_WHH = 8
W64_ROWS = W64_ENC_WHH + ENC_H
# 128-lane weight slab
W128_DEC_WXG = 0                              # 2 real rows, padded to 8
W128_DEC_WHH = 8
W128_DEC_WREC = W128_DEC_WHH + DEC_H
W128_DEC_WHP = W128_DEC_WREC + DEC_H          # cols 0:2 are real, rest zero
W128_ROWS = W128_DEC_WHP + DEC_H
# bias slab rows (every row padded to 128 lanes)
B_ENC, B_POOL_FB, B_POOL_B2 = 0, 1, 2
B_CTX_B1, B_CTX_G1, B_CTX_BT1 = 3, 4, 5
B_CTX_B2, B_CTX_G2, B_CTX_BT2 = 6, 7, 8
B_DEC_B0, B_DEC_BREC, B_DEC_BHP = 9, 10, 11
B_ROWS = 12


def _lstm_update(gates, c, hid):
    """PyTorch LSTM cell update given pre-activation gates (order i, f, g, o)."""
    i = jax.nn.sigmoid(gates[:, 0 * hid:1 * hid])
    f = jax.nn.sigmoid(gates[:, 1 * hid:2 * hid])
    g = jnp.tanh(gates[:, 2 * hid:3 * hid])
    o = jax.nn.sigmoid(gates[:, 3 * hid:4 * hid])
    c_new = f * c + i * g
    h_new = o * jnp.tanh(c_new)
    return h_new, c_new


def _bn(v, gamma, beta):
    """BatchNorm1d with batch statistics (training-mode fresh module)."""
    mu = jnp.mean(v, axis=0, keepdims=True)
    var = jnp.mean((v - mu) * (v - mu), axis=0, keepdims=True)
    return (v - mu) * lax.rsqrt(var + 1e-5) * gamma + beta


# --------------------------- fused Generator kernel ---------------------------
def generator_kernel(obs_rel_ref, end_pos_ref, mask_add_ref,
                     w32_ref, w64_ref, w128_ref, b_ref, out_ref):
    f32 = jnp.float32
    T, N = OBS_LEN, BATCH

    # ------------------------------ Encoder ----------------------------------
    enc_wxg = w64_ref[W64_ENC_WXG:W64_ENC_WXG + 2, :]         # (2, 4*ENC_H)
    enc_whh = w64_ref[W64_ENC_WHH:W64_ENC_WHH + ENC_H, :]     # (ENC_H, 4*ENC_H)
    enc_b = b_ref[B_ENC:B_ENC + 1, 0:4 * ENC_H]               # (1, 4*ENC_H)

    obs = obs_rel_ref[...]                                    # (T*N, 2)
    # folded K=2 spatial embedding + biases hoisted off the serial h->h chain:
    # one VPU op over all timesteps (no lane-sparse loads inside the loop).
    xg_all = (obs[:, 0:1] * enc_wxg[0:1, :]
              + obs[:, 1:2] * enc_wxg[1:2, :] + enc_b)        # (T*N, 4*ENC_H)

    h = jnp.zeros((N, ENC_H), f32)
    c = jnp.zeros((N, ENC_H), f32)
    for t in range(T):                                        # fully unrolled
        gates = xg_all[t * N:(t + 1) * N, :] + jnp.dot(
            h, enc_whh, preferred_element_type=f32)
        h, c = _lstm_update(gates, c, ENC_H)
    final_h = h                                               # (N, ENC_H)

    # --------------------------- PoolingModule --------------------------------
    pool_fw = w32_ref[W32_POOL_FW:W32_POOL_FW + 2, :]         # (2, P) folded
    pool_w1h = w32_ref[W32_POOL_W1H:W32_POOL_W1H + ENC_H, :]
    pool_w2 = w32_ref[W32_POOL_W2:W32_POOL_W2 + POOL_MLP, :]
    pool_fb = b_ref[B_POOL_FB:B_POOL_FB + 1, 0:POOL_MLP]
    pool_b2 = b_ref[B_POOL_B2:B_POOL_B2 + 1, 0:BOTTLENECK]

    pos = end_pos_ref[...]                                    # (N, 2)
    pos_proj = pos[:, 0:1] * pool_fw[0:1, :] + pos[:, 1:2] * pool_fw[1:2, :]
    hid_proj = jnp.dot(final_h, pool_w1h, preferred_element_type=f32)
    base = pos_proj + hid_proj + pool_fb                      # (N, P)
    # batched over all (i, j) pairs: diff[i, j] = ReLU(base[j] - pos_proj[i])
    diff = jnp.maximum(
        base.reshape(1, N, POOL_MLP) - pos_proj.reshape(N, 1, POOL_MLP), 0.0)
    z = jnp.maximum(
        jnp.dot(diff.reshape(N * N, POOL_MLP), pool_w2,
                preferred_element_type=f32) + pool_b2, 0.0)   # (N*N, B)
    # additive -1e30 for cross-sequence pairs; diagonal (self) is always valid,
    # so the sentinel never leaks into pool_h.
    z = z + mask_add_ref[...]
    pool_h = jnp.max(z.reshape(N, N, BOTTLENECK), axis=1)     # (N, B)

    # ------------------------ mlp_decoder_context -----------------------------
    ctx_w1h = w32_ref[W32_CTX_W1H:W32_CTX_W1H + ENC_H, :]
    ctx_w1p = w32_ref[W32_CTX_W1P:W32_CTX_W1P + BOTTLENECK, :]
    ctx_w2 = w32_ref[W32_CTX_W2:W32_CTX_W2 + MLP_DIM, :]
    ctx_b1 = b_ref[B_CTX_B1:B_CTX_B1 + 1, 0:MLP_DIM]
    ctx_g1 = b_ref[B_CTX_G1:B_CTX_G1 + 1, 0:MLP_DIM]
    ctx_bt1 = b_ref[B_CTX_BT1:B_CTX_BT1 + 1, 0:MLP_DIM]
    ctx_b2 = b_ref[B_CTX_B2:B_CTX_B2 + 1, 0:DEC_H]
    ctx_g2 = b_ref[B_CTX_G2:B_CTX_G2 + 1, 0:DEC_H]
    ctx_bt2 = b_ref[B_CTX_BT2:B_CTX_BT2 + 1, 0:DEC_H]

    # concat([final_h, pool_h]) @ W1 expressed as split matmul (no lane concat)
    h1 = (jnp.dot(final_h, ctx_w1h, preferred_element_type=f32)
          + jnp.dot(pool_h, ctx_w1p, preferred_element_type=f32) + ctx_b1)
    h1 = jnp.maximum(_bn(h1, ctx_g1, ctx_bt1), 0.0)
    h2 = jnp.dot(h1, ctx_w2, preferred_element_type=f32) + ctx_b2
    dec_h = jnp.maximum(_bn(h2, ctx_g2, ctx_bt2), 0.0)
    # add_noise: noise_dim is None -> identity -> decoder_h = dec_h

    # ------------------------------ Decoder ------------------------------------
    # TODO(synk): pool_every_timestep pooling inside the decoder not implemented
    # (Decoder sub-module source not provided); pooling_type=None path only.
    dec_wxg = w128_ref[W128_DEC_WXG:W128_DEC_WXG + 2, :]      # (2, 4*DEC_H)
    dec_whh = w128_ref[W128_DEC_WHH:W128_DEC_WHH + DEC_H, :]
    dec_wrec = w128_ref[W128_DEC_WREC:W128_DEC_WREC + DEC_H, :]
    dec_whp = w128_ref[W128_DEC_WHP:W128_DEC_WHP + DEC_H, :]  # zero-padded cols
    dec_b0 = b_ref[B_DEC_B0:B_DEC_B0 + 1, :]
    dec_brec = b_ref[B_DEC_BREC:B_DEC_BREC + 1, :]
    dec_bhp = b_ref[B_DEC_BHP:B_DEC_BHP + 1, :]

    last_rel = obs[(T - 1) * N:T * N, :]                      # obs_traj_rel[-1]
    h = dec_h
    c = jnp.zeros((N, DEC_H), f32)
    # step 0: input is last_pos_rel (folded spatial embedding, VPU math)
    xg0 = (last_rel[:, 0:1] * dec_wxg[0:1, :]
           + last_rel[:, 1:2] * dec_wxg[1:2, :])
    gates = xg0 + jnp.dot(h, dec_whh, preferred_element_type=f32) + dec_b0
    h, c = _lstm_update(gates, c, DEC_H)
    hs = [h]
    # steps 1..PRED_LEN-1: rel feedback folded into W_rec = W_hh + W_hp @ W_xg
    for _ in range(1, PRED_LEN):
        gates = jnp.dot(h, dec_wrec, preferred_element_type=f32) + dec_brec
        h, c = _lstm_update(gates, c, DEC_H)
        hs.append(h)
    h_all = jnp.concatenate(hs, axis=0)                       # (PRED_LEN*N, DEC_H)
    # single lane-dense (.., 128) store; wrapper slices [:, :2]
    out_ref[...] = jnp.dot(h_all, dec_whp,
                           preferred_element_type=f32) + dec_bhp


@jax.jit
def generator_forward(folded, obs_traj, obs_traj_rel, same_seq_mask):
    end_pos = obs_traj[-1]                                    # (N, 2)
    obs_rel2 = obs_traj_rel.reshape(OBS_LEN * BATCH, 2)
    mask_add = jnp.where(same_seq_mask > 0.5, 0.0, -1e30).astype(jnp.float32)
    mask_add = mask_add.reshape(BATCH * BATCH, 1)
    args = (obs_rel2, end_pos, mask_add,
            folded["w32"], folded["w64"], folded["w128"], folded["bias"])
    out = pl.pallas_call(
        generator_kernel,
        out_shape=jax.ShapeDtypeStruct((PRED_LEN * BATCH, OUT_PAD), jnp.float32),
        in_specs=[VMEM] * len(args),
        out_specs=VMEM,
    )(*args)
    return out[:, :2].reshape(PRED_LEN, BATCH, 2)             # pred_traj_fake_rel


# --------------------- parameter init (module layout) -------------------------
def init_params(key):
    ks = list(jax.random.split(key, 32))

    def uni(shape, fan_in):
        bound = 1.0 / (fan_in ** 0.5)
        return jax.random.uniform(ks.pop(), shape, jnp.float32, -bound, bound)

    p = {}
    # Encoder (spatial Linear(2->EMB) + LSTM(EMB->ENC_H))
    p["enc_w_se"] = uni((2, EMB), 2)
    p["enc_b_se"] = uni((1, EMB), 2)
    p["enc_w_ih"] = uni((EMB, 4 * ENC_H), ENC_H)
    p["enc_w_hh"] = uni((ENC_H, 4 * ENC_H), ENC_H)
    p["enc_b_ih"] = uni((1, 4 * ENC_H), ENC_H)
    p["enc_b_hh"] = uni((1, 4 * ENC_H), ENC_H)
    # PoolingModule  # TODO(synk): source not provided; pooling MLP has no BN
    p["pool_w_se"] = uni((2, EMB), 2)
    p["pool_b_se"] = uni((1, EMB), 2)
    p["pool_w1e"] = uni((EMB, POOL_MLP), EMB + ENC_H)
    p["pool_w1h"] = uni((ENC_H, POOL_MLP), EMB + ENC_H)
    p["pool_b1"] = uni((1, POOL_MLP), EMB + ENC_H)
    p["pool_w2"] = uni((POOL_MLP, BOTTLENECK), POOL_MLP)
    p["pool_b2"] = uni((1, BOTTLENECK), POOL_MLP)
    # mlp_decoder_context (Linear -> BN -> ReLU -> Linear -> BN -> ReLU)
    p["ctx_w1"] = uni((ENC_H + BOTTLENECK, MLP_DIM), ENC_H + BOTTLENECK)
    p["ctx_b1"] = uni((1, MLP_DIM), ENC_H + BOTTLENECK)
    p["ctx_g1"] = jnp.ones((1, MLP_DIM), jnp.float32)
    p["ctx_bt1"] = jnp.zeros((1, MLP_DIM), jnp.float32)
    p["ctx_w2"] = uni((MLP_DIM, DEC_H), MLP_DIM)
    p["ctx_b2"] = uni((1, DEC_H), MLP_DIM)
    p["ctx_g2"] = jnp.ones((1, DEC_H), jnp.float32)
    p["ctx_bt2"] = jnp.zeros((1, DEC_H), jnp.float32)
    # Decoder (spatial Linear(2->EMB) + LSTM(EMB->DEC_H) + Linear(DEC_H->2))
    p["dec_w_se"] = uni((2, EMB), 2)
    p["dec_b_se"] = uni((1, EMB), 2)
    p["dec_w_ih"] = uni((EMB, 4 * DEC_H), DEC_H)
    p["dec_w_hh"] = uni((DEC_H, 4 * DEC_H), DEC_H)
    p["dec_b_ih"] = uni((1, 4 * DEC_H), DEC_H)
    p["dec_b_hh"] = uni((1, 4 * DEC_H), DEC_H)
    p["dec_w_hp"] = uni((DEC_H, 2), DEC_H)
    p["dec_b_hp"] = uni((1, 2), DEC_H)
    return p


def _pad_rows(m, rows):
    return jnp.pad(m, ((0, rows - m.shape[0]), (0, 0)))


def _pad_cols(m, cols):
    return jnp.pad(m, ((0, 0), (0, cols - m.shape[1])))


def fold_params(p):
    """Precompute all linear-into-linear folds once and pack into 4 slabs."""
    p = {k: jnp.asarray(v, jnp.float32) for k, v in p.items()}
    # Encoder: embedding folded into LSTM input weights / bias
    enc_wxg = p["enc_w_se"] @ p["enc_w_ih"]                         # (2, 4H)
    enc_b = p["enc_b_se"] @ p["enc_w_ih"] + p["enc_b_ih"] + p["enc_b_hh"]
    # Pool: rel-pos embedding folded into first MLP Linear
    pool_fw = p["pool_w_se"] @ p["pool_w1e"]                        # (2, P)
    pool_fb = p["pool_b_se"] @ p["pool_w1e"] + p["pool_b1"]
    # Decoder: embedding folded; rel feedback folded into recurrent weight
    dec_wxg = p["dec_w_se"] @ p["dec_w_ih"]                         # (2, 4H)
    dec_bxg = p["dec_b_se"] @ p["dec_w_ih"]
    dec_b0 = dec_bxg + p["dec_b_ih"] + p["dec_b_hh"]
    dec_wrec = p["dec_w_hh"] + p["dec_w_hp"] @ dec_wxg
    dec_brec = dec_b0 + p["dec_b_hp"] @ dec_wxg

    w32 = jnp.concatenate([
        _pad_rows(pool_fw, 8), p["pool_w1h"], p["pool_w2"],
        p["ctx_w1"][:ENC_H], p["ctx_w1"][ENC_H:], p["ctx_w2"]], axis=0)
    w64 = jnp.concatenate([_pad_rows(enc_wxg, 8), p["enc_w_hh"]], axis=0)
    w128 = jnp.concatenate([
        _pad_rows(dec_wxg, 8), p["dec_w_hh"], dec_wrec,
        _pad_cols(p["dec_w_hp"], OUT_PAD)], axis=0)
    bias = jnp.concatenate([
        _pad_cols(enc_b, OUT_PAD), _pad_cols(pool_fb, OUT_PAD),
        _pad_cols(p["pool_b2"], OUT_PAD),
        _pad_cols(p["ctx_b1"], OUT_PAD), _pad_cols(p["ctx_g1"], OUT_PAD),
        _pad_cols(p["ctx_bt1"], OUT_PAD),
        _pad_cols(p["ctx_b2"], OUT_PAD), _pad_cols(p["ctx_g2"], OUT_PAD),
        _pad_cols(p["ctx_bt2"], OUT_PAD),
        dec_b0, dec_brec, _pad_cols(p["dec_b_hp"], OUT_PAD)], axis=0)

    assert w32.shape == (W32_ROWS, POOL_MLP)
    assert w64.shape == (W64_ROWS, 4 * ENC_H)
    assert w128.shape == (W128_ROWS, 4 * DEC_H)
    assert bias.shape == (B_ROWS, OUT_PAD)
    return {"w32": w32, "w64": w64, "w128": w128, "bias": bias}


if __name__ == "__main__":
    key = jax.random.PRNGKey(0)
    kp, k1, k2 = jax.random.split(key, 3)

    params = init_params(kp)
    folded = fold_params(params)

    obs_traj = jax.random.normal(k1, (OBS_LEN, BATCH, 2), jnp.float32)
    obs_traj_rel = jax.random.normal(k2, (OBS_LEN, BATCH, 2), jnp.float32)

    # seq_start_end = [(0, 3), (3, 8)] -> per-pedestrian sequence id -> same-seq mask
    seq_start_end = [(0, 3), (3, 8)]
    ids = []
    for sid, (s, e) in enumerate(seq_start_end):
        ids += [sid] * (e - s)
    seq_ids = jnp.asarray(ids, jnp.int32).reshape(BATCH, 1)
    same_seq_mask = (seq_ids == seq_ids.T).astype(jnp.float32)      # (N, N)

    pred_traj_fake_rel = generator_forward(folded, obs_traj, obs_traj_rel,
                                           same_seq_mask)
    pred_traj_fake_rel = jax.block_until_ready(pred_traj_fake_rel)

    assert pred_traj_fake_rel.shape == (PRED_LEN, BATCH, 2)
    assert bool(jnp.all(jnp.isfinite(pred_traj_fake_rel)))
    print("KERNEL_OK")
</pallas_src>

<mosaic_0001>
module attributes {stable_mosaic.version = 11 : i64} {
  func.func @generator_kernel(%arg0: memref<64x2xf32, #tpu.memory_space<vmem>>, %arg1: memref<8x2xf32, #tpu.memory_space<vmem>>, %arg2: memref<64x1xf32, #tpu.memory_space<vmem>>, %arg3: memref<136x32xf32, #tpu.memory_space<vmem>>, %arg4: memref<24x64xf32, #tpu.memory_space<vmem>>, %arg5: memref<104x128xf32, #tpu.memory_space<vmem>>, %arg6: memref<12x128xf32, #tpu.memory_space<vmem>>, %arg7: memref<32x128xf32, #tpu.memory_space<vmem>>) attributes {dimension_semantics = [], scalar_prefetch = 0 : i64, scratch_operands = 0 : i64, tpu.core_type = #tpu.core_type<tc>} {
    %c0 = arith.constant 0 : index
    %c0_0 = arith.constant 0 : index
    %0 = vector.load %arg4[%c0, %c0_0] : memref<24x64xf32, #tpu.memory_space<vmem>>, vector<2x64xf32>
    %c8 = arith.constant 8 : index
    %c0_1 = arith.constant 0 : index
    %1 = vector.load %arg4[%c8, %c0_1] : memref<24x64xf32, #tpu.memory_space<vmem>>, vector<16x64xf32>
    %c0_2 = arith.constant 0 : index
    %c0_3 = arith.constant 0 : index
    %2 = vector.load %arg6[%c0_2, %c0_3] : memref<12x128xf32, #tpu.memory_space<vmem>>, vector<1x64xf32>
    %c0_4 = arith.constant 0 : index
    %c0_5 = arith.constant 0 : index
    %3 = vector.load %arg0[%c0_4, %c0_5] : memref<64x2xf32, #tpu.memory_space<vmem>>, vector<64x2xf32>
    %4 = vector.extract_strided_slice %3 {offsets = [0, 0], sizes = [64, 1], strides = [1, 1]} : vector<64x2xf32> to vector<64x1xf32>
    %5 = vector.extract_strided_slice %0 {offsets = [0, 0], sizes = [1, 64], strides = [1, 1]} : vector<2x64xf32> to vector<1x64xf32>
    %6 = vector.broadcast %4 : vector<64x1xf32> to vector<64x64xf32>
    %7 = vector.broadcast %5 : vector<1x64xf32> to vector<64x64xf32>
    %8 = arith.mulf %6, %7 : vector<64x64xf32>
    %9 = vector.extract_strided_slice %3 {offsets = [0, 1], sizes = [64, 1], strides = [1, 1]} : vector<64x2xf32> to vector<64x1xf32>
    %10 = vector.extract_strided_slice %0 {offsets = [1, 0], sizes = [1, 64], strides = [1, 1]} : vector<2x64xf32> to vector<1x64xf32>
    %11 = vector.broadcast %9 : vector<64x1xf32> to vector<64x64xf32>
    %12 = vector.broadcast %10 : vector<1x64xf32> to vector<64x64xf32>
    %13 = arith.mulf %11, %12 : vector<64x64xf32>
    %14 = arith.addf %8, %13 : vector<64x64xf32>
    %15 = vector.broadcast %2 : vector<1x64xf32> to vector<64x64xf32>
    %16 = arith.addf %14, %15 : vector<64x64xf32>
    %cst = arith.constant 0.000000e+00 : f32
    %17 = vector.broadcast %cst : f32 to vector<8x16xf32>
    %cst_6 = arith.constant 0.000000e+00 : f32
    %18 = vector.broadcast %cst_6 : f32 to vector<8x16xf32>
    %19 = vector.extract_strided_slice %16 {offsets = [0, 0], sizes = [8, 64], strides = [1, 1]} : vector<64x64xf32> to vector<8x64xf32>
    %cst_7 = arith.constant dense<0.000000e+00> : vector<8x64xf32>
    %20 = tpu.matmul %17, %1, %cst_7 {dimension_numbers = #tpu.dot_dimension_numbers<[1], [0], [0], [1], [0, 0, 1, 1], [], []>} : vector<8x16xf32>, vector<16x64xf32>, vector<8x64xf32> -> vector<8x64xf32>
    %21 = arith.addf %19, %20 : vector<8x64xf32>
    %22 = vector.extract_strided_slice %21 {offsets = [0, 0], sizes = [8, 16], strides = [1, 1]} : vector<8x64xf32> to vector<8x16xf32>
    %23 = arith.negf %22 : vector<8x16xf32>
    %24 = math.exp %23 : vector<8x16xf32>
    %cst_8 = arith.constant 1.000000e+00 : f32
    %25 = vector.broadcast %cst_8 : f32 to vector<8x16xf32>
    %26 = arith.addf %25, %24 : vector<8x16xf32>
    %27 = arith.divf %25, %26 : vector<8x16xf32>
    %28 = vector.extract_strided_slice %21 {offsets = [0, 16], sizes = [8, 16], strides = [1, 1]} : vector<8x64xf32> to vector<8x16xf32>
    %29 = arith.negf %28 : vector<8x16xf32>
    %30 = math.exp %29 : vector<8x16xf32>
    %cst_9 = arith.constant 1.000000e+00 : f32
    %31 = vector.broadcast %cst_9 : f32 to vector<8x16xf32>
    %32 = arith.addf %31, %30 : vector<8x16xf32>
    %33 = arith.divf %31, %32 : vector<8x16xf32>
    %34 = vector.extract_strided_slice %21 {offsets = [0, 32], sizes = [8, 16], strides = [1, 1]} : vector<8x64xf32> to vector<8x16xf32>
    %35 = math.tanh %34 : vector<8x16xf32>
    %36 = vector.extract_strided_slice %21 {offsets = [0, 48], sizes = [8, 16], strides = [1, 1]} : vector<8x64xf32> to vector<8x16xf32>
    %37 = arith.negf %36 : vector<8x16xf32>
    %38 = math.exp %37 : vector<8x16xf32>
    %cst_10 = arith.constant 1.000000e+00 : f32
    %39 = vector.broadcast %cst_10 : f32 to vector<8x16xf32>
    %40 = arith.addf %39, %38 : vector<8x16xf32>
    %41 = arith.divf %39, %40 : vector<8x16xf32>
    %42 = arith.mulf %33, %18 : vector<8x16xf32>
    %43 = arith.mulf %27, %35 : vector<8x16xf32>
    %44 = arith.addf %42, %43 : vector<8x16xf32>
    %45 = math.tanh %44 : vector<8x16xf32>
    %46 = arith.mulf %41, %45 : vector<8x16xf32>
    %47 = vector.extract_strided_slice %16 {offsets = [8, 0], sizes = [8, 64], strides = [1, 1]} : vector<64x64xf32> to vector<8x64xf32>
    %cst_11 = arith.constant dense<0.000000e+00> : vector<8x64xf32>
    %48 = tpu.matmul %46, %1, %cst_11 {dimension_numbers = #tpu.dot_dimension_numbers<[1], [0], [0], [1], [0, 0, 1, 1], [], []>} : vector<8x16xf32>, vector<16x64xf32>, vector<8x64xf32> -> vector<8x64xf32>
    %49 = arith.addf %47, %48 : vector<8x64xf32>
    %50 = vector.extract_strided_slice %49 {offsets = [0, 0], sizes = [8, 16], strides = [1, 1]} : vector<8x64xf32> to vector<8x16xf32>
    %51 = arith.negf %50 : vector<8x16xf32>
    %52 = math.exp %51 : vector<8x16xf32>
    %cst_12 = arith.constant 1.000000e+00 : f32
    %53 = vector.broadcast %cst_12 : f32 to vector<8x16xf32>
    %54 = arith.addf %53, %52 : vector<8x16xf32>
    %55 = arith.divf %53, %54 : vector<8x16xf32>
    %56 = vector.extract_strided_slice %49 {offsets = [0, 16], sizes = [8, 16], strides = [1, 1]} : vector<8x64xf32> to vector<8x16xf32>
    %57 = arith.negf %56 : vector<8x16xf32>
    %58 = math.exp %57 : vector<8x16xf32>
    %cst_13 = arith.constant 1.000000e+00 : f32
    %59 = vector.broadcast %cst_13 : f32 to vector<8x16xf32>
    %60 = arith.addf %59, %58 : vector<8x16xf32>
    %61 = arith.divf %59, %60 : vector<8x16xf32>
    %62 = vector.extract_strided_slice %49 {offsets = [0, 32], sizes = [8, 16], strides = [1, 1]} : vector<8x64xf32> to vector<8x16xf32>
    %63 = math.tanh %62 : vector<8x16xf32>
    %64 = vector.extract_strided_slice %49 {offsets = [0, 48], sizes = [8, 16], strides = [1, 1]} : vector<8x64xf32> to vector<8x16xf32>
    %65 = arith.negf %64 : vector<8x16xf32>
    %66 = math.exp %65 : vector<8x16xf32>
    %cst_14 = arith.constant 1.000000e+00 : f32
    %67 = vector.broadcast %cst_14 : f32 to vector<8x16xf32>
    %68 = arith.addf %67, %66 : vector<8x16xf32>
    %69 = arith.divf %67, %68 : vector<8x16xf32>
    %70 = arith.mulf %61, %44 : vector<8x16xf32>
    %71 = arith.mulf %55, %63 : vector<8x16xf32>
    %72 = arith.addf %70, %71 : vector<8x16xf32>
    %73 = math.tanh %72 : vector<8x16xf32>
    %74 = arith.mulf %69, %73 : vector<8x16xf32>
    %75 = vector.extract_strided_slice %16 {offsets = [16, 0], sizes = [8, 64], strides = [1, 1]} : vector<64x64xf32> to vector<8x64xf32>
    %cst_15 = arith.constant dense<0.000000e+00> : vector<8x64xf32>
    %76 = tpu.matmul %74, %1, %cst_15 {dimension_numbers = #tpu.dot_dimension_numbers<[1], [0], [0], [1], [0, 0, 1, 1], [], []>} : vector<8x16xf32>, vector<16x64xf32>, vector<8x64xf32> -> vector<8x64xf32>
    %77 = arith.addf %75, %76 : vector<8x64xf32>
    %78 = vector.extract_strided_slice %77 {offsets = [0, 0], sizes = [8, 16], strides = [1, 1]} : vector<8x64xf32> to vector<8x16xf32>
    %79 = arith.negf %78 : vector<8x16xf32>
    %80 = math.exp %79 : vector<8x16xf32>
    %cst_16 = arith.constant 1.000000e+00 : f32
    %81 = vector.broadcast %cst_16 : f32 to vector<8x16xf32>
    %82 = arith.addf %81, %80 : vector<8x16xf32>
    %83 = arith.divf %81, %82 : vector<8x16xf32>
    %84 = vector.extract_strided_slice %77 {offsets = [0, 16], sizes = [8, 16], strides = [1, 1]} : vector<8x64xf32> to vector<8x16xf32>
    %85 = arith.negf %84 : vector<8x16xf32>
    %86 = math.exp %85 : vector<8x16xf32>
    %cst_17 = arith.constant 1.000000e+00 : f32
    %87 = vector.broadcast %cst_17 : f32 to vector<8x16xf32>
    %88 = arith.addf %87, %86 : vector<8x16xf32>
    %89 = arith.divf %87, %88 : vector<8x16xf32>
    %90 = vector.extract_strided_slice %77 {offsets = [0, 32], sizes = [8, 16], strides = [1, 1]} : vector<8x64xf32> to vector<8x16xf32>
    %91 = math.tanh %90 : vector<8x16xf32>
    %92 = vector.extract_strided_slice %77 {offsets = [0, 48], sizes = [8, 16], strides = [1, 1]} : vector<8x64xf32> to vector<8x16xf32>
    %93 = arith.negf %92 : vector<8x16xf32>
    %94 = math.exp %93 : vector<8x16xf32>
    %cst_18 = arith.constant 1.000000e+00 : f32
    %95 = vector.broadcast %cst_18 : f32 to vector<8x16xf32>
    %96 = arith.addf %95, %94 : vector<8x16xf32>
    %97 = arith.divf %95, %96 : vector<8x16xf32>
    %98 = arith.mulf %89, %72 : vector<8x16xf32>
    %99 = arith.mulf %83, %91 : vector<8x16xf32>
    %100 = arith.addf %98, %99 : vector<8x16xf32>
    %101 = math.tanh %100 : vector<8x16xf32>
    %102 = arith.mulf %97, %101 : vector<8x16xf32>
    %103 = vector.extract_strided_slice %16 {offsets = [24, 0], sizes = [8, 64], strides = [1, 1]} : vector<64x64xf32> to vector<8x64xf32>
    %cst_19 = arith.constant dense<0.000000e+00> : vector<8x64xf32>
    %104 = tpu.matmul %102, %1, %cst_19 {dimension_numbers = #tpu.dot_dimension_numbers<[1], [0], [0], [1], [0, 0, 1, 1], [], []>} : vector<8x16xf32>, vector<16x64xf32>, vector<8x64xf32> -> vector<8x64xf32>
    %105 = arith.addf %103, %104 : vector<8x64xf32>
    %106 = vector.extract_strided_slice %105 {offsets = [0, 0], sizes = [8, 16], strides = [1, 1]} : vector<8x64xf32> to vector<8x16xf32>
    %107 = arith.negf %106 : vector<8x16xf32>
    %108 = math.exp %107 : vector<8x16xf32>
    %cst_20 = arith.constant 1.000000e+00 : f32
    %109 = vector.broadcast %cst_20 : f32 to vector<8x16xf32>
    %110 = arith.addf %109, %108 : vector<8x16xf32>
    %111 = arith.divf %109, %110 : vector<8x16xf32>
    %112 = vector.extract_strided_slice %105 {offsets = [0, 16], sizes = [8, 16], strides = [1, 1]} : vector<8x64xf32> to vector<8x16xf32>
    %113 = arith.negf %112 : vector<8x16xf32>
    %114 = math.exp %113 : vector<8x16xf32>
    %cst_21 = arith.constant 1.000000e+00 : f32
    %115 = vector.broadcast %cst_21 : f32 to vector<8x16xf32>
    %116 = arith.addf %115, %114 : vector<8x16xf32>
    %117 = arith.divf %115, %116 : vector<8x16xf32>
    %118 = vector.extract_strided_slice %105 {offsets = [0, 32], sizes = [8, 16], strides = [1, 1]} : vector<8x64xf32> to vector<8x16xf32>
    %119 = math.tanh %118 : vector<8x16xf32>
    %120 = vector.extract_strided_slice %105 {offsets = [0, 48], sizes = [8, 16], strides = [1, 1]} : vector<8x64xf32> to vector<8x16xf32>
    %121 = arith.negf %120 : vector<8x16xf32>
    %122 = math.exp %121 : vector<8x16xf32>
    %cst_22 = arith.constant 1.000000e+00 : f32
    %123 = vector.broadcast %cst_22 : f32 to vector<8x16xf32>
    %124 = arith.addf %123, %122 : vector<8x16xf32>
    %125 = arith.divf %123, %124 : vector<8x16xf32>
    %126 = arith.mulf %117, %100 : vector<8x16xf32>
    %127 = arith.mulf %111, %119 : vector<8x16xf32>
    %128 = arith.addf %126, %127 : vector<8x16xf32>
    %129 = math.tanh %128 : vector<8x16xf32>
    %130 = arith.mulf %125, %129 : vector<8x16xf32>
    %131 = vector.extract_strided_slice %16 {offsets = [32, 0], sizes = [8, 64], strides = [1, 1]} : vector<64x64xf32> to vector<8x64xf32>
    %cst_23 = arith.constant dense<0.000000e+00> : vector<8x64xf32>
    %132 = tpu.matmul %130, %1, %cst_23 {dimension_numbers = #tpu.dot_dimension_numbers<[1], [0], [0], [1], [0, 0, 1, 1], [], []>} : vector<8x16xf32>, vector<16x64xf32>, vector<8x64xf32> -> vector<8x64xf32>
    %133 = arith.addf %131, %132 : vector<8x64xf32>
    %134 = vector.extract_strided_slice %133 {offsets = [0, 0], sizes = [8, 16], strides = [1, 1]} : vector<8x64xf32> to vector<8x16xf32>
    %135 = arith.negf %134 : vector<8x16xf32>
    %136 = math.exp %135 : vector<8x16xf32>
    %cst_24 = arith.constant 1.000000e+00 : f32
    %137 = vector.broadcast %cst_24 : f32 to vector<8x16xf32>
    %138 = arith.addf %137, %136 : vector<8x16xf32>
    %139 = arith.divf %137, %138 : vector<8x16xf32>
    %140 = vector.extract_strided_slice %133 {offsets = [0, 16], sizes = [8, 16], strides = [1, 1]} : vector<8x64xf32> to vector<8x16xf32>
    %141 = arith.negf %140 : vector<8x16xf32>
    %142 = math.exp %141 : vector<8x16xf32>
    %cst_25 = arith.constant 1.000000e+00 : f32
    %143 = vector.broadcast %cst_25 : f32 to vector<8x16xf32>
    %144 = arith.addf %143, %142 : vector<8x16xf32>
    %145 = arith.divf %143, %144 : vector<8x16xf32>
    %146 = vector.extract_strided_slice %133 {offsets = [0, 32], sizes = [8, 16], strides = [1, 1]} : vector<8x64xf32> to vector<8x16xf32>
    %147 = math.tanh %146 : vector<8x16xf32>
    %148 = vector.extract_strided_slice %133 {offsets = [0, 48], sizes = [8, 16], strides = [1, 1]} : vector<8x64xf32> to vector<8x16xf32>
    %149 = arith.negf %148 : vector<8x16xf32>
    %150 = math.exp %149 : vector<8x16xf32>
    %cst_26 = arith.constant 1.000000e+00 : f32
    %151 = vector.broadcast %cst_26 : f32 to vector<8x16xf32>
    %152 = arith.addf %151, %150 : vector<8x16xf32>
    %153 = arith.divf %151, %152 : vector<8x16xf32>
    %154 = arith.mulf %145, %128 : vector<8x16xf32>
    %155 = arith.mulf %139, %147 : vector<8x16xf32>
    %156 = arith.addf %154, %155 : vector<8x16xf32>
    %157 = math.tanh %156 : vector<8x16xf32>
    %158 = arith.mulf %153, %157 : vector<8x16xf32>
    %159 = vector.extract_strided_slice %16 {offsets = [40, 0], sizes = [8, 64], strides = [1, 1]} : vector<64x64xf32> to vector<8x64xf32>
    %cst_27 = arith.constant dense<0.000000e+00> : vector<8x64xf32>
    %160 = tpu.matmul %158, %1, %cst_27 {dimension_numbers = #tpu.dot_dimension_numbers<[1], [0], [0], [1], [0, 0, 1, 1], [], []>} : vector<8x16xf32>, vector<16x64xf32>, vector<8x64xf32> -> vector<8x64xf32>
    %161 = arith.addf %159, %160 : vector<8x64xf32>
    %162 = vector.extract_strided_slice %161 {offsets = [0, 0], sizes = [8, 16], strides = [1, 1]} : vector<8x64xf32> to vector<8x16xf32>
    %163 = arith.negf %162 : vector<8x16xf32>
    %164 = math.exp %163 : vector<8x16xf32>
    %cst_28 = arith.constant 1.000000e+00 : f32
    %165 = vector.broadcast %cst_28 : f32 to vector<8x16xf32>
    %166 = arith.addf %165, %164 : vector<8x16xf32>
    %167 = arith.divf %165, %166 : vector<8x16xf32>
    %168 = vector.extract_strided_slice %161 {offsets = [0, 16], sizes = [8, 16], strides = [1, 1]} : vector<8x64xf32> to vector<8x16xf32>
    %169 = arith.negf %168 : vector<8x16xf32>
    %170 = math.exp %169 : vector<8x16xf32>
    %cst_29 = arith.constant 1.000000e+00 : f32
    %171 = vector.broadcast %cst_29 : f32 to vector<8x16xf32>
    %172 = arith.addf %171, %170 : vector<8x16xf32>
    %173 = arith.divf %171, %172 : vector<8x16xf32>
    %174 = vector.extract_strided_slice %161 {offsets = [0, 32], sizes = [8, 16], strides = [1, 1]} : vector<8x64xf32> to vector<8x16xf32>
    %175 = math.tanh %174 : vector<8x16xf32>
    %176 = vector.extract_strided_slice %161 {offsets = [0, 48], sizes = [8, 16], strides = [1, 1]} : vector<8x64xf32> to vector<8x16xf32>
    %177 = arith.negf %176 : vector<8x16xf32>
    %178 = math.exp %177 : vector<8x16xf32>
    %cst_30 = arith.constant 1.000000e+00 : f32
    %179 = vector.broadcast %cst_30 : f32 to vector<8x16xf32>
    %180 = arith.addf %179, %178 : vector<8x16xf32>
    %181 = arith.divf %179, %180 : vector<8x16xf32>
    %182 = arith.mulf %173, %156 : vector<8x16xf32>
    %183 = arith.mulf %167, %175 : vector<8x16xf32>
    %184 = arith.addf %182, %183 : vector<8x16xf32>
    %185 = math.tanh %184 : vector<8x16xf32>
    %186 = arith.mulf %181, %185 : vector<8x16xf32>
    %187 = vector.extract_strided_slice %16 {offsets = [48, 0], sizes = [8, 64], strides = [1, 1]} : vector<64x64xf32> to vector<8x64xf32>
    %cst_31 = arith.constant dense<0.000000e+00> : vector<8x64xf32>
    %188 = tpu.matmul %186, %1, %cst_31 {dimension_numbers = #tpu.dot_dimension_numbers<[1], [0], [0], [1], [0, 0, 1, 1], [], []>} : vector<8x16xf32>, vector<16x64xf32>, vector<8x64xf32> -> vector<8x64xf32>
    %189 = arith.addf %187, %188 : vector<8x64xf32>
    %190 = vector.extract_strided_slice %189 {offsets = [0, 0], sizes = [8, 16], strides = [1, 1]} : vector<8x64xf32> to vector<8x16xf32>
    %191 = arith.negf %190 : vector<8x16xf32>
    %192 = math.exp %191 : vector<8x16xf32>
    %cst_32 = arith.constant 1.000000e+00 : f32
    %193 = vector.broadcast %cst_32 : f32 to vector<8x16xf32>
    %194 = arith.addf %193, %192 : vector<8x16xf32>
    %195 = arith.divf %193, %194 : vector<8x16xf32>
    %196 = vector.extract_strided_slice %189 {offsets = [0, 16], sizes = [8, 16], strides = [1, 1]} : vector<8x64xf32> to vector<8x16xf32>
    %197 = arith.negf %196 : vector<8x16xf32>
    %198 = math.exp %197 : vector<8x16xf32>
    %cst_33 = arith.constant 1.000000e+00 : f32
    %199 = vector.broadcast %cst_33 : f32 to vector<8x16xf32>
    %200 = arith.addf %199, %198 : vector<8x16xf32>
    %201 = arith.divf %199, %200 : vector<8x16xf32>
    %202 = vector.extract_strided_slice %189 {offsets = [0, 32], sizes = [8, 16], strides = [1, 1]} : vector<8x64xf32> to vector<8x16xf32>
    %203 = math.tanh %202 : vector<8x16xf32>
    %204 = vector.extract_strided_slice %189 {offsets = [0, 48], sizes = [8, 16], strides = [1, 1]} : vector<8x64xf32> to vector<8x16xf32>
    %205 = arith.negf %204 : vector<8x16xf32>
    %206 = math.exp %205 : vector<8x16xf32>
    %cst_34 = arith.constant 1.000000e+00 : f32
    %207 = vector.broadcast %cst_34 : f32 to vector<8x16xf32>
    %208 = arith.addf %207, %206 : vector<8x16xf32>
    %209 = arith.divf %207, %208 : vector<8x16xf32>
    %210 = arith.mulf %201, %184 : vector<8x16xf32>
    %211 = arith.mulf %195, %203 : vector<8x16xf32>
    %212 = arith.addf %210, %211 : vector<8x16xf32>
    %213 = math.tanh %212 : vector<8x16xf32>
    %214 = arith.mulf %209, %213 : vector<8x16xf32>
    %215 = vector.extract_strided_slice %16 {offsets = [56, 0], sizes = [8, 64], strides = [1, 1]} : vector<64x64xf32> to vector<8x64xf32>
    %cst_35 = arith.constant dense<0.000000e+00> : vector<8x64xf32>
    %216 = tpu.matmul %214, %1, %cst_35 {dimension_numbers = #tpu.dot_dimension_numbers<[1], [0], [0], [1], [0, 0, 1, 1], [], []>} : vector<8x16xf32>, vector<16x64xf32>, vector<8x64xf32> -> vector<8x64xf32>
    %217 = arith.addf %215, %216 : vector<8x64xf32>
    %218 = vector.extract_strided_slice %217 {offsets = [0, 0], sizes = [8, 16], strides = [1, 1]} : vector<8x64xf32> to vector<8x16xf32>
    %219 = arith.negf %218 : vector<8x16xf32>
    %220 = math.exp %219 : vector<8x16xf32>
    %cst_36 = arith.constant 1.000000e+00 : f32
    %221 = vector.broadcast %cst_36 : f32 to vector<8x16xf32>
    %222 = arith.addf %221, %220 : vector<8x16xf32>
    %223 = arith.divf %221, %222 : vector<8x16xf32>
    %224 = vector.extract_strided_slice %217 {offsets = [0, 16], sizes = [8, 16], strides = [1, 1]} : vector<8x64xf32> to vector<8x16xf32>
    %225 = arith.negf %224 : vector<8x16xf32>
    %226 = math.exp %225 : vector<8x16xf32>
    %cst_37 = arith.constant 1.000000e+00 : f32
    %227 = vector.broadcast %cst_37 : f32 to vector<8x16xf32>
    %228 = arith.addf %227, %226 : vector<8x16xf32>
    %229 = arith.divf %227, %228 : vector<8x16xf32>
    %230 = vector.extract_strided_slice %217 {offsets = [0, 32], sizes = [8, 16], strides = [1, 1]} : vector<8x64xf32> to vector<8x16xf32>
    %231 = math.tanh %230 : vector<8x16xf32>
    %232 = vector.extract_strided_slice %217 {offsets = [0, 48], sizes = [8, 16], strides = [1, 1]} : vector<8x64xf32> to vector<8x16xf32>
    %233 = arith.negf %232 : vector<8x16xf32>
    %234 = math.exp %233 : vector<8x16xf32>
    %cst_38 = arith.constant 1.000000e+00 : f32
    %235 = vector.broadcast %cst_38 : f32 to vector<8x16xf32>
    %236 = arith.addf %235, %234 : vector<8x16xf32>
    %237 = arith.divf %235, %236 : vector<8x16xf32>
    %238 = arith.mulf %229, %212 : vector<8x16xf32>
    %239 = arith.mulf %223, %231 : vector<8x16xf32>
    %240 = arith.addf %238, %239 : vector<8x16xf32>
    %241 = math.tanh %240 : vector<8x16xf32>
    %242 = arith.mulf %237, %241 : vector<8x16xf32>
    %c0_39 = arith.constant 0 : index
    %c0_40 = arith.constant 0 : index
    %243 = vector.load %arg3[%c0_39, %c0_40] : memref<136x32xf32, #tpu.memory_space<vmem>>, vector<2x32xf32>
    %c8_41 = arith.constant 8 : index
    %c0_42 = arith.constant 0 : index
    %244 = vector.load %arg3[%c8_41, %c0_42] : memref<136x32xf32, #tpu.memory_space<vmem>>, vector<16x32xf32>
    %c24 = arith.constant 24 : index
    %c0_43 = arith.constant 0 : index
    %245 = vector.load %arg3[%c24, %c0_43] : memref<136x32xf32, #tpu.memory_space<vmem>>, vector<32x32xf32>
    %c1 = arith.constant 1 : index
    %c0_44 = arith.constant 0 : index
    %246 = vector.load %arg6[%c1, %c0_44] : memref<12x128xf32, #tpu.memory_space<vmem>>, vector<1x32xf32>
    %c2 = arith.constant 2 : index
    %c0_45 = arith.constant 0 : index
    %247 = vector.load %arg6[%c2, %c0_45] : memref<12x128xf32, #tpu.memory_space<vmem>>, vector<1x32xf32>
    %c0_46 = arith.constant 0 : index
    %c0_47 = arith.constant 0 : index
    %248 = vector.load %arg1[%c0_46, %c0_47] : memref<8x2xf32, #tpu.memory_space<vmem>>, vector<8x2xf32>
    %249 = vector.extract_strided_slice %248 {offsets = [0, 0], sizes = [8, 1], strides = [1, 1]} : vector<8x2xf32> to vector<8x1xf32>
    %250 = vector.extract_strided_slice %243 {offsets = [0, 0], sizes = [1, 32], strides = [1, 1]} : vector<2x32xf32> to vector<1x32xf32>
    %251 = vector.broadcast %249 : vector<8x1xf32> to vector<8x32xf32>
    %252 = vector.broadcast %250 : vector<1x32xf32> to vector<8x32xf32>
    %253 = arith.mulf %251, %252 : vector<8x32xf32>
    %254 = vector.extract_strided_slice %248 {offsets = [0, 1], sizes = [8, 1], strides = [1, 1]} : vector<8x2xf32> to vector<8x1xf32>
    %255 = vector.extract_strided_slice %243 {offsets = [1, 0], sizes = [1, 32], strides = [1, 1]} : vector<2x32xf32> to vector<1x32xf32>
    %256 = vector.broadcast %254 : vector<8x1xf32> to vector<8x32xf32>
    %257 = vector.broadcast %255 : vector<1x32xf32> to vector<8x32xf32>
    %258 = arith.mulf %256, %257 : vector<8x32xf32>
    %259 = arith.addf %253, %258 : vector<8x32xf32>
    %cst_48 = arith.constant dense<0.000000e+00> : vector<8x32xf32>
    %260 = tpu.matmul %242, %244, %cst_48 {dimension_numbers = #tpu.dot_dimension_numbers<[1], [0], [0], [1], [0, 0, 1, 1], [], []>} : vector<8x16xf32>, vector<16x32xf32>, vector<8x32xf32> -> vector<8x32xf32>
    %261 = arith.addf %259, %260 : vector<8x32xf32>
    %262 = vector.broadcast %246 : vector<1x32xf32> to vector<8x32xf32>
    %263 = arith.addf %261, %262 : vector<8x32xf32>
    %264 = vector.shape_cast %263 : vector<8x32xf32> to vector<1x8x32xf32>
    %265 = vector.shape_cast %259 : vector<8x32xf32> to vector<8x1x32xf32>
    %266 = vector.broadcast %264 : vector<1x8x32xf32> to vector<8x8x32xf32>
    %267 = vector.broadcast %265 : vector<8x1x32xf32> to vector<8x8x32xf32>
    %268 = arith.subf %266, %267 : vector<8x8x32xf32>
    %cst_49 = arith.constant 0.000000e+00 : f32
    %269 = vector.broadcast %cst_49 : f32 to vector<8x8x32xf32>
    %270 = arith.maximumf %268, %269 : vector<8x8x32xf32>
    %271 = vector.shape_cast %270 : vector<8x8x32xf32> to vector<64x32xf32>
    %cst_50 = arith.constant dense<0.000000e+00> : vector<64x32xf32>
    %272 = tpu.matmul %271, %245, %cst_50 {dimension_numbers = #tpu.dot_dimension_numbers<[1], [0], [0], [1], [0, 0, 1, 1], [], []>} : vector<64x32xf32>, vector<32x32xf32>, vector<64x32xf32> -> vector<64x32xf32>
    %273 = vector.broadcast %247 : vector<1x32xf32> to vector<64x32xf32>
    %274 = arith.addf %272, %273 : vector<64x32xf32>
    %cst_51 = arith.constant 0.000000e+00 : f32
    %275 = vector.broadcast %cst_51 : f32 to vector<64x32xf32>
    %276 = arith.maximumf %274, %275 : vector<64x32xf32>
    %c0_52 = arith.constant 0 : index
    %c0_53 = arith.constant 0 : index
    %277 = vector.load %arg2[%c0_52, %c0_53] : memref<64x1xf32, #tpu.memory_space<vmem>>, vector<64x1xf32>
    %278 = vector.broadcast %277 : vector<64x1xf32> to vector<64x32xf32>
    %279 = arith.addf %276, %278 : vector<64x32xf32>
    %280 = vector.shape_cast %279 : vector<64x32xf32> to vector<8x8x32xf32>
    %cst_54 = arith.constant dense<0xFF800000> : vector<8x32xf32>
    %281 = vector.multi_reduction <maximumf>, %280, %cst_54 [1] : vector<8x8x32xf32> to vector<8x32xf32>
    %c56 = arith.constant 56 : index
    %c0_55 = arith.constant 0 : index
    %282 = vector.load %arg3[%c56, %c0_55] : memref<136x32xf32, #tpu.memory_space<vmem>>, vector<16x32xf32>
    %c72 = arith.constant 72 : index
    %c0_56 = arith.constant 0 : index
    %283 = vector.load %arg3[%c72, %c0_56] : memref<136x32xf32, #tpu.memory_space<vmem>>, vector<32x32xf32>
    %c104 = arith.constant 104 : index
    %c0_57 = arith.constant 0 : index
    %284 = vector.load %arg3[%c104, %c0_57] : memref<136x32xf32, #tpu.memory_space<vmem>>, vector<32x32xf32>
    %c3 = arith.constant 3 : index
    %c0_58 = arith.constant 0 : index
    %285 = vector.load %arg6[%c3, %c0_58] : memref<12x128xf32, #tpu.memory_space<vmem>>, vector<1x32xf32>
    %c4 = arith.constant 4 : index
    %c0_59 = arith.constant 0 : index
    %286 = vector.load %arg6[%c4, %c0_59] : memref<12x128xf32, #tpu.memory_space<vmem>>, vector<1x32xf32>
    %c5 = arith.constant 5 : index
    %c0_60 = arith.constant 0 : index
    %287 = vector.load %arg6[%c5, %c0_60] : memref<12x128xf32, #tpu.memory_space<vmem>>, vector<1x32xf32>
    %c6 = arith.constant 6 : index
    %c0_61 = arith.constant 0 : index
    %288 = vector.load %arg6[%c6, %c0_61] : memref<12x128xf32, #tpu.memory_space<vmem>>, vector<1x32xf32>
    %c7 = arith.constant 7 : index
    %c0_62 = arith.constant 0 : index
    %289 = vector.load %arg6[%c7, %c0_62] : memref<12x128xf32, #tpu.memory_space<vmem>>, vector<1x32xf32>
    %c8_63 = arith.constant 8 : index
    %c0_64 = arith.constant 0 : index
    %290 = vector.load %arg6[%c8_63, %c0_64] : memref<12x128xf32, #tpu.memory_space<vmem>>, vector<1x32xf32>
    %cst_65 = arith.constant dense<0.000000e+00> : vector<8x32xf32>
    %291 = tpu.matmul %242, %282, %cst_65 {dimension_numbers = #tpu.dot_dimension_numbers<[1], [0], [0], [1], [0, 0, 1, 1], [], []>} : vector<8x16xf32>, vector<16x32xf32>, vector<8x32xf32> -> vector<8x32xf32>
    %cst_66 = arith.constant dense<0.000000e+00> : vector<8x32xf32>
    %292 = tpu.matmul %281, %283, %cst_66 {dimension_numbers = #tpu.dot_dimension_numbers<[1], [0], [0], [1], [0, 0, 1, 1], [], []>} : vector<8x32xf32>, vector<32x32xf32>, vector<8x32xf32> -> vector<8x32xf32>
    %293 = arith.addf %291, %292 : vector<8x32xf32>
    %294 = vector.broadcast %285 : vector<1x32xf32> to vector<8x32xf32>
    %295 = arith.addf %293, %294 : vector<8x32xf32>
    %cst_67 = arith.constant dense<0.000000e+00> : vector<32xf32>
    %296 = vector.multi_reduction <add>, %295, %cst_67 [0] : vector<8x32xf32> to vector<32xf32>
    %297 = vector.shape_cast %296 : vector<32xf32> to vector<1x32xf32>
    %cst_68 = arith.constant 8.000000e+00 : f32
    %298 = vector.broadcast %cst_68 : f32 to vector<1x32xf32>
    %299 = arith.divf %297, %298 : vector<1x32xf32>
    %300 = vector.broadcast %299 : vector<1x32xf32> to vector<8x32xf32>
    %301 = arith.subf %295, %300 : vector<8x32xf32>
    %302 = vector.broadcast %299 : vector<1x32xf32> to vector<8x32xf32>
    %303 = arith.subf %295, %302 : vector<8x32xf32>
    %304 = arith.mulf %301, %303 : vector<8x32xf32>
    %cst_69 = arith.constant dense<0.000000e+00> : vector<32xf32>
    %305 = vector.multi_reduction <add>, %304, %cst_69 [0] : vector<8x32xf32> to vector<32xf32>
    %306 = vector.shape_cast %305 : vector<32xf32> to vector<1x32xf32>
    %cst_70 = arith.constant 8.000000e+00 : f32
    %307 = vector.broadcast %cst_70 : f32 to vector<1x32xf32>
    %308 = arith.divf %306, %307 : vector<1x32xf32>
    %309 = vector.broadcast %299 : vector<1x32xf32> to vector<8x32xf32>
    %310 = arith.subf %295, %309 : vector<8x32xf32>
    %cst_71 = arith.constant 9.99999974E-6 : f32
    %311 = vector.broadcast %cst_71 : f32 to vector<1x32xf32>
    %312 = arith.addf %308, %311 : vector<1x32xf32>
    %313 = math.rsqrt %312 : vector<1x32xf32>
    %314 = vector.broadcast %313 : vector<1x32xf32> to vector<8x32xf32>
    %315 = arith.mulf %310, %314 : vector<8x32xf32>
    %316 = vector.broadcast %286 : vector<1x32xf32> to vector<8x32xf32>
    %317 = arith.mulf %315, %316 : vector<8x32xf32>
    %318 = vector.broadcast %287 : vector<1x32xf32> to vector<8x32xf32>
    %319 = arith.addf %317, %318 : vector<8x32xf32>
    %cst_72 = arith.constant 0.000000e+00 : f32
    %320 = vector.broadcast %cst_72 : f32 to vector<8x32xf32>
    %321 = arith.maximumf %319, %320 : vector<8x32xf32>
    %cst_73 = arith.constant dense<0.000000e+00> : vector<8x32xf32>
    %322 = tpu.matmul %321, %284, %cst_73 {dimension_numbers = #tpu.dot_dimension_numbers<[1], [0], [0], [1], [0, 0, 1, 1], [], []>} : vector<8x32xf32>, vector<32x32xf32>, vector<8x32xf32> -> vector<8x32xf32>
    %323 = vector.broadcast %288 : vector<1x32xf32> to vector<8x32xf32>
    %324 = arith.addf %322, %323 : vector<8x32xf32>
    %cst_74 = arith.constant dense<0.000000e+00> : vector<32xf32>
    %325 = vector.multi_reduction <add>, %324, %cst_74 [0] : vector<8x32xf32> to vector<32xf32>
    %326 = vector.shape_cast %325 : vector<32xf32> to vector<1x32xf32>
    %cst_75 = arith.constant 8.000000e+00 : f32
    %327 = vector.broadcast %cst_75 : f32 to vector<1x32xf32>
    %328 = arith.divf %326, %327 : vector<1x32xf32>
    %329 = vector.broadcast %328 : vector<1x32xf32> to vector<8x32xf32>
    %330 = arith.subf %324, %329 : vector<8x32xf32>
    %331 = vector.broadcast %328 : vector<1x32xf32> to vector<8x32xf32>
    %332 = arith.subf %324, %331 : vector<8x32xf32>
    %333 = arith.mulf %330, %332 : vector<8x32xf32>
    %cst_76 = arith.constant dense<0.000000e+00> : vector<32xf32>
    %334 = vector.multi_reduction <add>, %333, %cst_76 [0] : vector<8x32xf32> to vector<32xf32>
    %335 = vector.shape_cast %334 : vector<32xf32> to vector<1x32xf32>
    %cst_77 = arith.constant 8.000000e+00 : f32
    %336 = vector.broadcast %cst_77 : f32 to vector<1x32xf32>
    %337 = arith.divf %335, %336 : vector<1x32xf32>
    %338 = vector.broadcast %328 : vector<1x32xf32> to vector<8x32xf32>
    %339 = arith.subf %324, %338 : vector<8x32xf32>
    %cst_78 = arith.constant 9.99999974E-6 : f32
    %340 = vector.broadcast %cst_78 : f32 to vector<1x32xf32>
    %341 = arith.addf %337, %340 : vector<1x32xf32>
    %342 = math.rsqrt %341 : vector<1x32xf32>
    %343 = vector.broadcast %342 : vector<1x32xf32> to vector<8x32xf32>
    %344 = arith.mulf %339, %343 : vector<8x32xf32>
    %345 = vector.broadcast %289 : vector<1x32xf32> to vector<8x32xf32>
    %346 = arith.mulf %344, %345 : vector<8x32xf32>
    %347 = vector.broadcast %290 : vector<1x32xf32> to vector<8x32xf32>
    %348 = arith.addf %346, %347 : vector<8x32xf32>
    %cst_79 = arith.constant 0.000000e+00 : f32
    %349 = vector.broadcast %cst_79 : f32 to vector<8x32xf32>
    %350 = arith.maximumf %348, %349 : vector<8x32xf32>
    %c0_80 = arith.constant 0 : index
    %c0_81 = arith.constant 0 : index
    %351 = vector.load %arg5[%c0_80, %c0_81] : memref<104x128xf32, #tpu.memory_space<vmem>>, vector<2x128xf32>
    %c8_82 = arith.constant 8 : index
    %c0_83 = arith.constant 0 : index
    %352 = vector.load %arg5[%c8_82, %c0_83] : memref<104x128xf32, #tpu.memory_space<vmem>>, vector<32x128xf32>
    %c40 = arith.constant 40 : index
    %c0_84 = arith.constant 0 : index
    %353 = vector.load %arg5[%c40, %c0_84] : memref<104x128xf32, #tpu.memory_space<vmem>>, vector<32x128xf32>
    %c72_85 = arith.constant 72 : index
    %c0_86 = arith.constant 0 : index
    %354 = vector.load %arg5[%c72_85, %c0_86] : memref<104x128xf32, #tpu.memory_space<vmem>>, vector<32x128xf32>
    %c9 = arith.constant 9 : index
    %c0_87 = arith.constant 0 : index
    %355 = vector.load %arg6[%c9, %c0_87] : memref<12x128xf32, #tpu.memory_space<vmem>>, vector<1x128xf32>
    %c10 = arith.constant 10 : index
    %c0_88 = arith.constant 0 : index
    %356 = vector.load %arg6[%c10, %c0_88] : memref<12x128xf32, #tpu.memory_space<vmem>>, vector<1x128xf32>
    %c11 = arith.constant 11 : index
    %c0_89 = arith.constant 0 : index
    %357 = vector.load %arg6[%c11, %c0_89] : memref<12x128xf32, #tpu.memory_space<vmem>>, vector<1x128xf32>
    %358 = vector.extract_strided_slice %3 {offsets = [56, 0], sizes = [8, 2], strides = [1, 1]} : vector<64x2xf32> to vector<8x2xf32>
    %cst_90 = arith.constant 0.000000e+00 : f32
    %359 = vector.broadcast %cst_90 : f32 to vector<8x32xf32>
    %360 = vector.extract_strided_slice %358 {offsets = [0, 0], sizes = [8, 1], strides = [1, 1]} : vector<8x2xf32> to vector<8x1xf32>
    %361 = vector.extract_strided_slice %351 {offsets = [0, 0], sizes = [1, 128], strides = [1, 1]} : vector<2x128xf32> to vector<1x128xf32>
    %362 = vector.broadcast %360 : vector<8x1xf32> to vector<8x128xf32>
    %363 = vector.broadcast %361 : vector<1x128xf32> to vector<8x128xf32>
    %364 = arith.mulf %362, %363 : vector<8x128xf32>
    %365 = vector.extract_strided_slice %358 {offsets = [0, 1], sizes = [8, 1], strides = [1, 1]} : vector<8x2xf32> to vector<8x1xf32>
    %366 = vector.extract_strided_slice %351 {offsets = [1, 0], sizes = [1, 128], strides = [1, 1]} : vector<2x128xf32> to vector<1x128xf32>
    %367 = vector.broadcast %365 : vector<8x1xf32> to vector<8x128xf32>
    %368 = vector.broadcast %366 : vector<1x128xf32> to vector<8x128xf32>
    %369 = arith.mulf %367, %368 : vector<8x128xf32>
    %370 = arith.addf %364, %369 : vector<8x128xf32>
    %cst_91 = arith.constant dense<0.000000e+00> : vector<8x128xf32>
    %371 = tpu.matmul %350, %352, %cst_91 {dimension_numbers = #tpu.dot_dimension_numbers<[1], [0], [0], [1], [0, 0, 1, 1], [], []>} : vector<8x32xf32>, vector<32x128xf32>, vector<8x128xf32> -> vector<8x128xf32>
    %372 = arith.addf %370, %371 : vector<8x128xf32>
    %373 = vector.broadcast %355 : vector<1x128xf32> to vector<8x128xf32>
    %374 = arith.addf %372, %373 : vector<8x128xf32>
    %375 = vector.extract_strided_slice %374 {offsets = [0, 0], sizes = [8, 32], strides = [1, 1]} : vector<8x128xf32> to vector<8x32xf32>
    %376 = arith.negf %375 : vector<8x32xf32>
    %377 = math.exp %376 : vector<8x32xf32>
    %cst_92 = arith.constant 1.000000e+00 : f32
    %378 = vector.broadcast %cst_92 : f32 to vector<8x32xf32>
    %379 = arith.addf %378, %377 : vector<8x32xf32>
    %380 = arith.divf %378, %379 : vector<8x32xf32>
    %381 = vector.extract_strided_slice %374 {offsets = [0, 32], sizes = [8, 32], strides = [1, 1]} : vector<8x128xf32> to vector<8x32xf32>
    %382 = arith.negf %381 : vector<8x32xf32>
    %383 = math.exp %382 : vector<8x32xf32>
    %cst_93 = arith.constant 1.000000e+00 : f32
    %384 = vector.broadcast %cst_93 : f32 to vector<8x32xf32>
    %385 = arith.addf %384, %383 : vector<8x32xf32>
    %386 = arith.divf %384, %385 : vector<8x32xf32>
    %387 = vector.extract_strided_slice %374 {offsets = [0, 64], sizes = [8, 32], strides = [1, 1]} : vector<8x128xf32> to vector<8x32xf32>
    %388 = math.tanh %387 : vector<8x32xf32>
    %389 = vector.extract_strided_slice %374 {offsets = [0, 96], sizes = [8, 32], strides = [1, 1]} : vector<8x128xf32> to vector<8x32xf32>
    %390 = arith.negf %389 : vector<8x32xf32>
    %391 = math.exp %390 : vector<8x32xf32>
    %cst_94 = arith.constant 1.000000e+00 : f32
    %392 = vector.broadcast %cst_94 : f32 to vector<8x32xf32>
    %393 = arith.addf %392, %391 : vector<8x32xf32>
    %394 = arith.divf %392, %393 : vector<8x32xf32>
    %395 = arith.mulf %386, %359 : vector<8x32xf32>
    %396 = arith.mulf %380, %388 : vector<8x32xf32>
    %397 = arith.addf %395, %396 : vector<8x32xf32>
    %398 = math.tanh %397 : vector<8x32xf32>
    %399 = arith.mulf %394, %398 : vector<8x32xf32>
    %cst_95 = arith.constant dense<0.000000e+00> : vector<8x128xf32>
    %400 = tpu.matmul %399, %353, %cst_95 {dimension_numbers = #tpu.dot_dimension_numbers<[1], [0], [0], [1], [0, 0, 1, 1], [], []>} : vector<8x32xf32>, vector<32x128xf32>, vector<8x128xf32> -> vector<8x128xf32>
    %401 = vector.broadcast %356 : vector<1x128xf32> to vector<8x128xf32>
    %402 = arith.addf %400, %401 : vector<8x128xf32>
    %403 = vector.extract_strided_slice %402 {offsets = [0, 0], sizes = [8, 32], strides = [1, 1]} : vector<8x128xf32> to vector<8x32xf32>
    %404 = arith.negf %403 : vector<8x32xf32>
    %405 = math.exp %404 : vector<8x32xf32>
    %cst_96 = arith.constant 1.000000e+00 : f32
    %406 = vector.broadcast %cst_96 : f32 to vector<8x32xf32>
    %407 = arith.addf %406, %405 : vector<8x32xf32>
    %408 = arith.divf %406, %407 : vector<8x32xf32>
    %409 = vector.extract_strided_slice %402 {offsets = [0, 32], sizes = [8, 32], strides = [1, 1]} : vector<8x128xf32> to vector<8x32xf32>
    %410 = arith.negf %409 : vector<8x32xf32>
    %411 = math.exp %410 : vector<8x32xf32>
    %cst_97 = arith.constant 1.000000e+00 : f32
    %412 = vector.broadcast %cst_97 : f32 to vector<8x32xf32>
    %413 = arith.addf %412, %411 : vector<8x32xf32>
    %414 = arith.divf %412, %413 : vector<8x32xf32>
    %415 = vector.extract_strided_slice %402 {offsets = [0, 64], sizes = [8, 32], strides = [1, 1]} : vector<8x128xf32> to vector<8x32xf32>
    %416 = math.tanh %415 : vector<8x32xf32>
    %417 = vector.extract_strided_slice %402 {offsets = [0, 96], sizes = [8, 32], strides = [1, 1]} : vector<8x128xf32> to vector<8x32xf32>
    %418 = arith.negf %417 : vector<8x32xf32>
    %419 = math.exp %418 : vector<8x32xf32>
    %cst_98 = arith.constant 1.000000e+00 : f32
    %420 = vector.broadcast %cst_98 : f32 to vector<8x32xf32>
    %421 = arith.addf %420, %419 : vector<8x32xf32>
    %422 = arith.divf %420, %421 : vector<8x32xf32>
    %423 = arith.mulf %414, %397 : vector<8x32xf32>
    %424 = arith.mulf %408, %416 : vector<8x32xf32>
    %425 = arith.addf %423, %424 : vector<8x32xf32>
    %426 = math.tanh %425 : vector<8x32xf32>
    %427 = arith.mulf %422, %426 : vector<8x32xf32>
    %cst_99 = arith.constant dense<0.000000e+00> : vector<8x128xf32>
    %428 = tpu.matmul %427, %353, %cst_99 {dimension_numbers = #tpu.dot_dimension_numbers<[1], [0], [0], [1], [0, 0, 1, 1], [], []>} : vector<8x32xf32>, vector<32x128xf32>, vector<8x128xf32> -> vector<8x128xf32>
    %429 = vector.broadcast %356 : vector<1x128xf32> to vector<8x128xf32>
    %430 = arith.addf %428, %429 : vector<8x128xf32>
    %431 = vector.extract_strided_slice %430 {offsets = [0, 0], sizes = [8, 32], strides = [1, 1]} : vector<8x128xf32> to vector<8x32xf32>
    %432 = arith.negf %431 : vector<8x32xf32>
    %433 = math.exp %432 : vector<8x32xf32>
    %cst_100 = arith.constant 1.000000e+00 : f32
    %434 = vector.broadcast %cst_100 : f32 to vector<8x32xf32>
    %435 = arith.addf %434, %433 : vector<8x32xf32>
    %436 = arith.divf %434, %435 : vector<8x32xf32>
    %437 = vector.extract_strided_slice %430 {offsets = [0, 32], sizes = [8, 32], strides = [1, 1]} : vector<8x128xf32> to vector<8x32xf32>
    %438 = arith.negf %437 : vector<8x32xf32>
    %439 = math.exp %438 : vector<8x32xf32>
    %cst_101 = arith.constant 1.000000e+00 : f32
    %440 = vector.broadcast %cst_101 : f32 to vector<8x32xf32>
    %441 = arith.addf %440, %439 : vector<8x32xf32>
    %442 = arith.divf %440, %441 : vector<8x32xf32>
    %443 = vector.extract_strided_slice %430 {offsets = [0, 64], sizes = [8, 32], strides = [1, 1]} : vector<8x128xf32> to vector<8x32xf32>
    %444 = math.tanh %443 : vector<8x32xf32>
    %445 = vector.extract_strided_slice %430 {offsets = [0, 96], sizes = [8, 32], strides = [1, 1]} : vector<8x128xf32> to vector<8x32xf32>
    %446 = arith.negf %445 : vector<8x32xf32>
    %447 = math.exp %446 : vector<8x32xf32>
    %cst_102 = arith.constant 1.000000e+00 : f32
    %448 = vector.broadcast %cst_102 : f32 to vector<8x32xf32>
    %449 = arith.addf %448, %447 : vector<8x32xf32>
    %450 = arith.divf %448, %449 : vector<8x32xf32>
    %451 = arith.mulf %442, %425 : vector<8x32xf32>
    %452 = arith.mulf %436, %444 : vector<8x32xf32>
    %453 = arith.addf %451, %452 : vector<8x32xf32>
    %454 = math.tanh %453 : vector<8x32xf32>
    %455 = arith.mulf %450, %454 : vector<8x32xf32>
    %cst_103 = arith.constant dense<0.000000e+00> : vector<8x128xf32>
    %456 = tpu.matmul %455, %353, %cst_103 {dimension_numbers = #tpu.dot_dimension_numbers<[1], [0], [0], [1], [0, 0, 1, 1], [], []>} : vector<8x32xf32>, vector<32x128xf32>, vector<8x128xf32> -> vector<8x128xf32>
    %457 = vector.broadcast %356 : vector<1x128xf32> to vector<8x128xf32>
    %458 = arith.addf %456, %457 : vector<8x128xf32>
    %459 = vector.extract_strided_slice %458 {offsets = [0, 0], sizes = [8, 32], strides = [1, 1]} : vector<8x128xf32> to vector<8x32xf32>
    %460 = arith.negf %459 : vector<8x32xf32>
    %461 = math.exp %460 : vector<8x32xf32>
    %cst_104 = arith.constant 1.000000e+00 : f32
    %462 = vector.broadcast %cst_104 : f32 to vector<8x32xf32>
    %463 = arith.addf %462, %461 : vector<8x32xf32>
    %464 = arith.divf %462, %463 : vector<8x32xf32>
    %465 = vector.extract_strided_slice %458 {offsets = [0, 32], sizes = [8, 32], strides = [1, 1]} : vector<8x128xf32> to vector<8x32xf32>
    %466 = arith.negf %465 : vector<8x32xf32>
    %467 = math.exp %466 : vector<8x32xf32>
    %cst_105 = arith.constant 1.000000e+00 : f32
    %468 = vector.broadcast %cst_105 : f32 to vector<8x32xf32>
    %469 = arith.addf %468, %467 : vector<8x32xf32>
    %470 = arith.divf %468, %469 : vector<8x32xf32>
    %471 = vector.extract_strided_slice %458 {offsets = [0, 64], sizes = [8, 32], strides = [1, 1]} : vector<8x128xf32> to vector<8x32xf32>
    %472 = math.tanh %471 : vector<8x32xf32>
    %473 = vector.extract_strided_slice %458 {offsets = [0, 96], sizes = [8, 32], strides = [1, 1]} : vector<8x128xf32> to vector<8x32xf32>
    %474 = arith.negf %473 : vector<8x32xf32>
    %475 = math.exp %474 : vector<8x32xf32>
    %cst_106 = arith.constant 1.000000e+00 : f32
    %476 = vector.broadcast %cst_106 : f32 to vector<8x32xf32>
    %477 = arith.addf %476, %475 : vector<8x32xf32>
    %478 = arith.divf %476, %477 : vector<8x32xf32>
    %479 = arith.mulf %470, %453 : vector<8x32xf32>
    %480 = arith.mulf %464, %472 : vector<8x32xf32>
    %481 = arith.addf %479, %480 : vector<8x32xf32>
    %482 = math.tanh %481 : vector<8x32xf32>
    %483 = arith.mulf %478, %482 : vector<8x32xf32>
    %484 = tpu.concatenate %399, %427, %455, %483 in 0 : vector<8x32xf32>, vector<8x32xf32>, vector<8x32xf32>, vector<8x32xf32> -> vector<32x32xf32>
    %cst_107 = arith.constant dense<0.000000e+00> : vector<32x128xf32>
    %485 = tpu.matmul %484, %354, %cst_107 {dimension_numbers = #tpu.dot_dimension_numbers<[1], [0], [0], [1], [0, 0, 1, 1], [], []>} : vector<32x32xf32>, vector<32x128xf32>, vector<32x128xf32> -> vector<32x128xf32>
    %486 = vector.broadcast %357 : vector<1x128xf32> to vector<32x128xf32>
    %487 = arith.addf %485, %486 : vector<32x128xf32>
    %c0_108 = arith.constant 0 : index
    %c0_109 = arith.constant 0 : index
    %488 = vector.load %arg7[%c0_108, %c0_109] : memref<32x128xf32, #tpu.memory_space<vmem>>, vector<32x128xf32>
    tpu.vector_store %arg7[%c0_108, %c0_109], %487 {strides = array<i32>} : memref<32x128xf32, #tpu.memory_space<vmem>>, vector<32x128xf32>,
    return
  }
}

</mosaic_0001>

<llo_original>
// kernel: generator_forward.1
$region0: #{generator_forward.1}
  #allocation0 [shape = 'u32[]', space=smem, size = 0x4, offset = 0x4, fixed_abs, tag = 'smem constant byte address 0x4 - core index']
  #allocation1 [shape = 'u32[144,128]{1,0:T(1,128)}', space=vmem, size = 0x12000, scoped, tag = 'internal scratch']
  %s0 = inlined_call_operand.vmem [shape: f32[64,2], index: 0, kind: input, shape index: {}]
  %s1 = inlined_call_operand.vmem [shape: f32[8,2], index: 1, kind: input, shape index: {}]
  %s2 = inlined_call_operand.vmem [shape: f32[64,1], index: 2, kind: input, shape index: {}]
  %s3 = inlined_call_operand.vmem [shape: f32[136,32], index: 3, kind: input, shape index: {}]
  %s4 = inlined_call_operand.vmem [shape: f32[24,64], index: 4, kind: input, shape index: {}]
  %s5 = inlined_call_operand.vmem [shape: f32[104,128], index: 5, kind: input, shape index: {}]
  %s6 = inlined_call_operand.vmem [shape: f32[12,128], index: 6, kind: input, shape index: {}]
  %s7 = inlined_call_operand.vmem [shape: f32[32,128], index: 7, kind: output, shape index: {}]
  %s8 = sld [smem:[#allocation0]]
  $region38: #{generator_forward.1} parent=0
    _
  %s10 = ssub.s32 1, %s8
  %s11 = scalar_select 0, %s10, %s8
  // Predicated region
  $region2: #{generator_forward.1} parent=0 // pred_check
    _
  $region3: #{generator_forward.1} parent=0 // pred_check_branch
    %13 = sbr.rel (0) target = $region5
  $region4: #{generator_forward.1} parent=0 // pred_region
    _
  $region5: #{generator_forward.1} parent=0 // pred_fallthru
    _
  // Predicated region
  $region6: #{generator_forward.1} parent=0 // pred_check
    _
  $region7: #{generator_forward.1} parent=0 // pred_check_branch
    %15 = sbr.rel (0) target = $region9
  $region8: #{generator_forward.1} parent=0 // pred_region
    _
  $region9: #{generator_forward.1} parent=0 // pred_fallthru
    _
  // Predicated region
  $region10: #{generator_forward.1} parent=0 // pred_check
    _
  $region11: #{generator_forward.1} parent=0 // pred_check_branch
    %17 = sbr.rel (0) target = $region13
  $region12: #{generator_forward.1} parent=0 // pred_region
    _
  $region13: #{generator_forward.1} parent=0 // pred_fallthru
    _
  // Predicated region
  $region14: #{generator_forward.1} parent=0 // pred_check
    _
  $region15: #{generator_forward.1} parent=0 // pred_check_branch
    %19 = sbr.rel (0) target = $region17
  $region16: #{generator_forward.1} parent=0 // pred_region
    _
  $region17: #{generator_forward.1} parent=0 // pred_fallthru
    _
  // Predicated region
  $region18: #{generator_forward.1} parent=0 // pred_check
    _
  $region19: #{generator_forward.1} parent=0 // pred_check_branch
    %21 = sbr.rel (0) target = $region21
  $region20: #{generator_forward.1} parent=0 // pred_region
    _
  $region21: #{generator_forward.1} parent=0 // pred_fallthru
    _
  // Predicated region
  $region22: #{generator_forward.1} parent=0 // pred_check
    _
  $region23: #{generator_forward.1} parent=0 // pred_check_branch
    %23 = sbr.rel (0) target = $region25
  $region24: #{generator_forward.1} parent=0 // pred_region
    _
  $region25: #{generator_forward.1} parent=0 // pred_fallthru
    _
  // Predicated region
  $region26: #{generator_forward.1} parent=0 // pred_check
    _
  $region27: #{generator_forward.1} parent=0 // pred_check_branch
    %25 = sbr.rel (0) target = $region29
  $region28: #{generator_forward.1} parent=0 // pred_region
    _
  $region29: #{generator_forward.1} parent=0 // pred_fallthru
    _
  %v26 = vld [vmem:[%s4] sm:$0x3]
  %v27 = vld [vmem:[%s4 + $0x8] sm:$0xff]
  %v28 = vld [vmem:[%s4 + $0x10] sm:$0xff]
  %v29 = vld [vmem:[%s6] sm:$0x1]
  %v30 = vld [vmem:[%s0] sm:$0xff]
  %v31 = vld [vmem:[%s0 + $0x8] sm:$0xff]
  %v32 = vld [vmem:[%s0 + $0x10] sm:$0xff]
  %v33 = vld [vmem:[%s0 + $0x18] sm:$0xff]
  %v34 = vld [vmem:[%s0 + $0x20] sm:$0xff]
  %v35 = vld [vmem:[%s0 + $0x28] sm:$0xff]
  %v36 = vld [vmem:[%s0 + $0x30] sm:$0xff]
  %v37 = vld [vmem:[%s0 + $0x38] sm:$0xff]
  %39 = vset.pattern.permute.xlu0 0
  %40 = vperm.xlu0 %39, %v30
  %v41 = vpop.permute.xlu0 %40
  %44 = vset.pattern.permute.xlu0 0
  %45 = vperm.xlu0 %44, %v31
  %v46 = vpop.permute.xlu0 %45
  %49 = vset.pattern.permute.xlu0 0
  %50 = vperm.xlu0 %49, %v32
  %v51 = vpop.permute.xlu0 %50
  %54 = vset.pattern.permute.xlu0 0
  %55 = vperm.xlu0 %54, %v33
  %v56 = vpop.permute.xlu0 %55
  %59 = vset.pattern.permute.xlu0 0
  %60 = vperm.xlu0 %59, %v34
  %v61 = vpop.permute.xlu0 %60
  %64 = vset.pattern.permute.xlu0 0
  %65 = vperm.xlu0 %64, %v35
  %v66 = vpop.permute.xlu0 %65
  %69 = vset.pattern.permute.xlu0 0
  %70 = vperm.xlu0 %69, %v36
  %v71 = vpop.permute.xlu0 %70
  %74 = vset.pattern.permute.xlu0 0
  %75 = vperm.xlu0 %74, %v37
  %v76 = vpop.permute.xlu0 %75
  %v78 = vlaneseq
  %v79 = vshrl.u32 %v78, 7
  %v80 = vsub.s32 0, %v79
  %v81 = vrot.slane %v26, %v80
  %v82 = vmul.f32 %v41, %v81
  %v83 = vmul.f32 %v46, %v81
  %v84 = vmul.f32 %v51, %v81
  %v85 = vmul.f32 %v56, %v81
  %v86 = vmul.f32 %v61, %v81
  %v87 = vmul.f32 %v66, %v81
  %v88 = vmul.f32 %v71, %v81
  %v89 = vmul.f32 %v76, %v81
  %90 = vset.pattern.permute.xlu0 1
  %91 = vperm.xlu0 %90, %v30
  %v92 = vpop.permute.xlu0 %91
  %94 = vset.pattern.permute.xlu0 1
  %95 = vperm.xlu0 %94, %v31
  %v96 = vpop.permute.xlu0 %95
  %98 = vset.pattern.permute.xlu0 1
  %99 = vperm.xlu0 %98, %v32
  %v100 = vpop.permute.xlu0 %99
  %102 = vset.pattern.permute.xlu0 1
  %103 = vperm.xlu0 %102, %v33
  %v104 = vpop.permute.xlu0 %103
  %106 = vset.pattern.permute.xlu0 1
  %107 = vperm.xlu0 %106, %v34
  %v108 = vpop.permute.xlu0 %107
  %110 = vset.pattern.permute.xlu0 1
  %111 = vperm.xlu0 %110, %v35
  %v112 = vpop.permute.xlu0 %111
  %114 = vset.pattern.permute.xlu0 1
  %115 = vperm.xlu0 %114, %v36
  %v116 = vpop.permute.xlu0 %115
  %118 = vset.pattern.permute.xlu0 1
  %119 = vperm.xlu0 %118, %v37
  %v120 = vpop.permute.xlu0 %119
  %v122 = vlaneseq
  %v123 = vshrl.u32 %v122, 7
  %v124 = vsub.s32 1, %v123
  %v125 = vrot.slane %v26, %v124
  %v126 = vmul.f32 %v92, %v125
  %v127 = vmul.f32 %v96, %v125
  %v128 = vmul.f32 %v100, %v125
  %v129 = vmul.f32 %v104, %v125
  %v130 = vmul.f32 %v108, %v125
  %v131 = vmul.f32 %v112, %v125
  %v132 = vmul.f32 %v116, %v125
  %v133 = vmul.f32 %v120, %v125
  %v134 = vadd.f32 %v82, %v126
  %v135 = vadd.f32 %v83, %v127
  %v136 = vadd.f32 %v84, %v128
  %v137 = vadd.f32 %v85, %v129
  %v138 = vadd.f32 %v86, %v130
  %v139 = vadd.f32 %v87, %v131
  %v140 = vadd.f32 %v88, %v132
  %v141 = vadd.f32 %v89, %v133
  %v142 = vlaneseq
  %v143 = vshrl.u32 %v142, 7
  %v144 = vsub.s32 0, %v143
  %v145 = vrot.slane %v29, %v144
  %v146 = vadd.f32 %v134, %v145
  %v147 = vadd.f32 %v135, %v145
  %v148 = vadd.f32 %v136, %v145
  %v149 = vadd.f32 %v137, %v145
  %v150 = vadd.f32 %v138, %v145
  %v151 = vadd.f32 %v139, %v145
  %v152 = vadd.f32 %v140, %v145
  %v153 = vadd.f32 %v141, %v145
  %vm154 = vcmask 130048
  %v156 = vsel %vm154, 0.0, 0
  %158 = vmatprep.subr.mxu0 0.0
  %159 = vmatpush1.msra.mxu0 %v27
  %160 = vmatprep.subr.mxu0 0.0
  %161 = vmatpush1.msra.mxu0 %v28
  %162 = vmatprep.subr.mxu0 0.0
  %163 = vmatpush1.msra.mxu0 0.0
  %164 = vmatprep.subr.mxu0 0.0
  %165 = vmatpush1.msra.mxu0 0.0
  %166 = vmatprep.subr.mxu0 0.0
  %167 = vmatpush1.msra.mxu0 0.0
  %168 = vmatprep.subr.mxu0 0.0
  %169 = vmatpush1.msra.mxu0 0.0
  %170 = vmatprep.subr.mxu0 0.0
  %171 = vmatpush1.msra.mxu0 0.0
  %172 = vmatprep.subr.mxu0 0.0
  %173 = vmatpush1.msra.mxu0 0.0
  %174 = vmatprep.subr.mxu0 0.0
  %175 = vmatpush1.msra.mxu0 0.0
  %176 = vmatprep.subr.mxu0 0.0
  %177 = vmatpush1.msra.mxu0 0.0
  %178 = vmatprep.subr.mxu0 0.0
  %179 = vmatpush1.msra.mxu0 0.0
  %180 = vmatprep.subr.mxu0 0.0
  %181 = vmatpush1.msra.mxu0 0.0
  %182 = vmatprep.subr.mxu0 0.0
  %183 = vmatpush1.msra.mxu0 0.0
  %184 = vmatprep.subr.mxu0 0.0
  %185 = vmatpush1.msra.mxu0 0.0
  %186 = vmatprep.subr.mxu0 0.0
  %187 = vmatpush1.msra.mxu0 0.0
  %188 = vmatprep.subr.mxu0 0.0
  %189 = vmatpush1.msra.mxu0 0.0
  %190 = vmatprep.subr.mxu0 0.0
  %191 = vmatpush1.msra.mxu0 0.0
  %192 = vmatprep.subr.mxu0 0.0
  %193 = vmatpush1.msra.mxu0 0.0
  %194 = vmatprep.subr.mxu0 0.0
  %195 = vmatpush1.msra.mxu0 0.0
  %196 = vmatprep.subr.mxu0 0.0
  %197 = vmatpush1.msra.mxu0 0.0
  %198 = vmatprep.subr.mxu0 0.0
  %199 = vmatpush1.msra.mxu0 0.0
  %200 = vmatprep.subr.mxu0 0.0
  %201 = vmatpush1.msra.mxu0 0.0
  %202 = vmatprep.subr.mxu0 0.0
  %203 = vmatpush1.msra.mxu0 0.0
  %204 = vmatprep.subr.mxu0 0.0
  %205 = vmatpush1.msra.mxu0 0.0
  %206 = vmatprep.subr.mxu0 0.0
  %207 = vmatpush1.msra.mxu0 0.0
  %208 = vmatprep.subr.mxu0 0.0
  %209 = vmatpush1.msra.mxu0 0.0
  %210 = vmatprep.subr.mxu0 0.0
  %211 = vmatpush1.msra.mxu0 0.0
  %212 = vmatprep.subr.mxu0 0.0
  %213 = vmatpush1.msra.mxu0 0.0
  %214 = vmatprep.subr.mxu0 0.0
  %215 = vmatpush1.msra.mxu0 0.0
  %216 = vmatprep.subr.mxu0 0.0
  %217 = vmatpush1.msra.mxu0 0.0
  %218 = vmatprep.subr.mxu0 0.0
  %219 = vmatpush1.msra.mxu0 0.0
  %220 = vmatprep.subr.mxu0 0.0
  %221 = vmatpush1.msra.mxu0 0.0
  %222 = vmatprep.mubr.f32.mxu0 0.0
  %223 = vmatmul.mubr.f32.gmra.mrb[0].mxu0 %v156
  %v224 = vpop.f32.mrb[0].mxu0
  %v225 = vadd.f32 0.0, %v224
  %v226 = vpop.f32.mrb[0].mxu0
  %227 = vdwg.mxu0
  %v228 = vadd.f32 %v146, %v225
  %v229 = vxor.u32 %v228, 2147483648
  %v230 = vmul.f32 %v229, 1.442695
  %v231 = vpow.pop %v230
  %v232 = vadd.f32 %v231, 1.0
  %v233 = vrcp.pop %v232
  %v234 = vmul.f32 1.0, %v233
  %v235 = vtanh.pop %v228
  %v236 = vmul.f32 %v234, 0.0
  %238 = vrot.lane.b32.xlu0 %v235, 96
  %v239 = vpop.permute.xlu0 %238
  %v241 = vmul.f32 %v234, %v239
  %243 = vrot.lane.b32.xlu0 %v241, 16
  %v244 = vpop.permute.xlu0 %243
  %v246 = vadd.f32 %v236, %v244
  %v247 = vtanh.pop %v246
  %249 = vrot.lane.b32.xlu0 %v247, 32
  %v250 = vpop.permute.xlu0 %249
  %v252 = vmul.f32 %v234, %v250
  %254 = vrot.lane.b32.xlu0 %v252, 80
  %v255 = vpop.permute.xlu0 %254
  %v256 = vsel %vm154, %v255, 0
  %258 = vmatprep.subr.mxu0 0.0
  %259 = vmatpush1.msra.mxu0 %v27
  %260 = vmatprep.subr.mxu0 0.0
  %261 = vmatpush1.msra.mxu0 %v28
  %262 = vmatprep.subr.mxu0 0.0
  %263 = vmatpush1.msra.mxu0 0.0
  %264 = vmatprep.subr.mxu0 0.0
  %265 = vmatpush1.msra.mxu0 0.0
  %266 = vmatprep.subr.mxu0 0.0
  %267 = vmatpush1.msra.mxu0 0.0
  %268 = vmatprep.subr.mxu0 0.0
  %269 = vmatpush1.msra.mxu0 0.0
  %270 = vmatprep.subr.mxu0 0.0
  %271 = vmatpush1.msra.mxu0 0.0
  %272 = vmatprep.subr.mxu0 0.0
  %273 = vmatpush1.msra.mxu0 0.0
  %274 = vmatprep.subr.mxu0 0.0
  %275 = vmatpush1.msra.mxu0 0.0
  %276 = vmatprep.subr.mxu0 0.0
  %277 = vmatpush1.msra.mxu0 0.0
  %278 = vmatprep.subr.mxu0 0.0
  %279 = vmatpush1.msra.mxu0 0.0
  %280 = vmatprep.subr.mxu0 0.0
  %281 = vmatpush1.msra.mxu0 0.0
  %282 = vmatprep.subr.mxu0 0.0
  %283 = vmatpush1.msra.mxu0 0.0
  %284 = vmatprep.subr.mxu0 0.0
  %285 = vmatpush1.msra.mxu0 0.0
  %286 = vmatprep.subr.mxu0 0.0
  %287 = vmatpush1.msra.mxu0 0.0
  %288 = vmatprep.subr.mxu0 0.0
  %289 = vmatpush1.msra.mxu0 0.0
  %290 = vmatprep.subr.mxu0 0.0
  %291 = vmatpush1.msra.mxu0 0.0
  %292 = vmatprep.subr.mxu0 0.0
  %293 = vmatpush1.msra.mxu0 0.0
  %294 = vmatprep.subr.mxu0 0.0
  %295 = vmatpush1.msra.mxu0 0.0
  %296 = vmatprep.subr.mxu0 0.0
  %297 = vmatpush1.msra.mxu0 0.0
  %298 = vmatprep.subr.mxu0 0.0
  %299 = vmatpush1.msra.mxu0 0.0
  %300 = vmatprep.subr.mxu0 0.0
  %301 = vmatpush1.msra.mxu0 0.0
  %302 = vmatprep.subr.mxu0 0.0
  %303 = vmatpush1.msra.mxu0 0.0
  %304 = vmatprep.subr.mxu0 0.0
  %305 = vmatpush1.msra.mxu0 0.0
  %306 = vmatprep.subr.mxu0 0.0
  %307 = vmatpush1.msra.mxu0 0.0
  %308 = vmatprep.subr.mxu0 0.0
  %309 = vmatpush1.msra.mxu0 0.0
  %310 = vmatprep.subr.mxu0 0.0
  %311 = vmatpush1.msra.mxu0 0.0
  %312 = vmatprep.subr.mxu0 0.0
  %313 = vmatpush1.msra.mxu0 0.0
  %314 = vmatprep.subr.mxu0 0.0
  %315 = vmatpush1.msra.mxu0 0.0
  %316 = vmatprep.subr.mxu0 0.0
  %317 = vmatpush1.msra.mxu0 0.0
  %318 = vmatprep.subr.mxu0 0.0
  %319 = vmatpush1.msra.mxu0 0.0
  %320 = vmatprep.subr.mxu0 0.0
  %321 = vmatpush1.msra.mxu0 0.0
  %322 = vmatprep.mubr.f32.mxu0 0.0
  %323 = vmatmul.mubr.f32.gmra.mrb[0].mxu0 %v256
  %v324 = vpop.f32.mrb[0].mxu0
  %v325 = vadd.f32 0.0, %v324
  %v326 = vpop.f32.mrb[0].mxu0
  %327 = vdwg.mxu0
  %v328 = vadd.f32 %v147, %v325
  %v329 = vxor.u32 %v328, 2147483648
  %v330 = vmul.f32 %v329, 1.442695
  %v331 = vpow.pop %v330
  %v332 = vadd.f32 %v331, 1.0
  %v333 = vrcp.pop %v332
  %v334 = vmul.f32 1.0, %v333
  %v335 = vtanh.pop %v328
  %v336 = vmul.f32 %v334, %v246
  %338 = vrot.lane.b32.xlu0 %v335, 96
  %v339 = vpop.permute.xlu0 %338
  %v341 = vmul.f32 %v334, %v339
  %343 = vrot.lane.b32.xlu0 %v341, 16
  %v344 = vpop.permute.xlu0 %343
  %v346 = vadd.f32 %v336, %v344
  %v347 = vtanh.pop %v346
  %349 = vrot.lane.b32.xlu0 %v347, 32
  %v350 = vpop.permute.xlu0 %349
  %v352 = vmul.f32 %v334, %v350
  %354 = vrot.lane.b32.xlu0 %v352, 80
  %v355 = vpop.permute.xlu0 %354
  %v356 = vsel %vm154, %v355, 0
  %358 = vmatprep.subr.mxu0 0.0
  %359 = vmatpush1.msra.mxu0 %v27
  %360 = vmatprep.subr.mxu0 0.0
  %361 = vmatpush1.msra.mxu0 %v28
  %362 = vmatprep.subr.mxu0 0.0
  %363 = vmatpush1.msra.mxu0 0.0
  %364 = vmatprep.subr.mxu0 0.0
  %365 = vmatpush1.msra.mxu0 0.0
  %366 = vmatprep.subr.mxu0 0.0
  %367 = vmatpush1.msra.mxu0 0.0
  %368 = vmatprep.subr.mxu0 0.0
  %369 = vmatpush1.msra.mxu0 0.0
  %370 = vmatprep.subr.mxu0 0.0
  %371 = vmatpush1.msra.mxu0 0.0
  %372 = vmatprep.subr.mxu0 0.0
  %373 = vmatpush1.msra.mxu0 0.0
  %374 = vmatprep.subr.mxu0 0.0
  %375 = vmatpush1.msra.mxu0 0.0
  %376 = vmatprep.subr.mxu0 0.0
  %377 = vmatpush1.msra.mxu0 0.0
  %378 = vmatprep.subr.mxu0 0.0
  %379 = vmatpush1.msra.mxu0 0.0
  %380 = vmatprep.subr.mxu0 0.0
  %381 = vmatpush1.msra.mxu0 0.0
  %382 = vmatprep.subr.mxu0 0.0
  %383 = vmatpush1.msra.mxu0 0.0
  %384 = vmatprep.subr.mxu0 0.0
  %385 = vmatpush1.msra.mxu0 0.0
  %386 = vmatprep.subr.mxu0 0.0
  %387 = vmatpush1.msra.mxu0 0.0
  %388 = vmatprep.subr.mxu0 0.0
  %389 = vmatpush1.msra.mxu0 0.0
  %390 = vmatprep.subr.mxu0 0.0
  %391 = vmatpush1.msra.mxu0 0.0
  %392 = vmatprep.subr.mxu0 0.0
  %393 = vmatpush1.msra.mxu0 0.0
  %394 = vmatprep.subr.mxu0 0.0
  %395 = vmatpush1.msra.mxu0 0.0
  %396 = vmatprep.subr.mxu0 0.0
  %397 = vmatpush1.msra.mxu0 0.0
  %398 = vmatprep.subr.mxu0 0.0
  %399 = vmatpush1.msra.mxu0 0.0
  %400 = vmatprep.subr.mxu0 0.0
  %401 = vmatpush1.msra.mxu0 0.0
  %402 = vmatprep.subr.mxu0 0.0
  %403 = vmatpush1.msra.mxu0 0.0
  %404 = vmatprep.subr.mxu0 0.0
  %405 = vmatpush1.msra.mxu0 0.0
  %406 = vmatprep.subr.mxu0 0.0
  %407 = vmatpush1.msra.mxu0 0.0
  %408 = vmatprep.subr.mxu0 0.0
  %409 = vmatpush1.msra.mxu0 0.0
  %410 = vmatprep.subr.mxu0 0.0
  %411 = vmatpush1.msra.mxu0 0.0
  %412 = vmatprep.subr.mxu0 0.0
  %413 = vmatpush1.msra.mxu0 0.0
  %414 = vmatprep.subr.mxu0 0.0
  %415 = vmatpush1.msra.mxu0 0.0
  %416 = vmatprep.subr.mxu0 0.0
  %417 = vmatpush1.msra.mxu0 0.0
  %418 = vmatprep.subr.mxu0 0.0
  %419 = vmatpush1.msra.mxu0 0.0
  %420 = vmatprep.subr.mxu0 0.0
  %421 = vmatpush1.msra.mxu0 0.0
  %422 = vmatprep.mubr.f32.mxu0 0.0
  %423 = vmatmul.mubr.f32.gmra.mrb[0].mxu0 %v356
  %v424 = vpop.f32.mrb[0].mxu0
  %v425 = vadd.f32 0.0, %v424
  %v426 = vpop.f32.mrb[0].mxu0
  %427 = vdwg.mxu0
  %v428 = vadd.f32 %v148, %v425
  %v429 = vxor.u32 %v428, 2147483648
  %v430 = vmul.f32 %v429, 1.442695
  %v431 = vpow.pop %v430
  %v432 = vadd.f32 %v431, 1.0
  %v433 = vrcp.pop %v432
  %v434 = vmul.f32 1.0, %v433
  %v435 = vtanh.pop %v428
  %v436 = vmul.f32 %v434, %v346
  %438 = vrot.lane.b32.xlu0 %v435, 96
  %v439 = vpop.permute.xlu0 %438
  %v441 = vmul.f32 %v434, %v439
  %443 = vrot.lane.b32.xlu0 %v441, 16
  %v444 = vpop.permute.xlu0 %443
  %v446 = vadd.f32 %v436, %v444
  %v447 = vtanh.pop %v446
  %449 = vrot.lane.b32.xlu0 %v447, 32
  %v450 = vpop.permute.xlu0 %449
  %v452 = vmul.f32 %v434, %v450
  %454 = vrot.lane.b32.xlu0 %v452, 80
  %v455 = vpop.permute.xlu0 %454
  %v456 = vsel %vm154, %v455, 0
  %458 = vmatprep.subr.mxu0 0.0
  %459 = vmatpush1.msra.mxu0 %v27
  %460 = vmatprep.subr.mxu0 0.0
  %461 = vmatpush1.msra.mxu0 %v28
  %462 = vmatprep.subr.mxu0 0.0
  %463 = vmatpush1.msra.mxu0 0.0
  %464 = vmatprep.subr.mxu0 0.0
  %465 = vmatpush1.msra.mxu0 0.0
  %466 = vmatprep.subr.mxu0 0.0
  %467 = vmatpush1.msra.mxu0 0.0
  %468 = vmatprep.subr.mxu0 0.0
  %469 = vmatpush1.msra.mxu0 0.0
  %470 = vmatprep.subr.mxu0 0.0
  %471 = vmatpush1.msra.mxu0 0.0
  %472 = vmatprep.subr.mxu0 0.0
  %473 = vmatpush1.msra.mxu0 0.0
  %474 = vmatprep.subr.mxu0 0.0
  %475 = vmatpush1.msra.mxu0 0.0
  %476 = vmatprep.subr.mxu0 0.0
  %477 = vmatpush1.msra.mxu0 0.0
  %478 = vmatprep.subr.mxu0 0.0
  %479 = vmatpush1.msra.mxu0 0.0
  %480 = vmatprep.subr.mxu0 0.0
  %481 = vmatpush1.msra.mxu0 0.0
  %482 = vmatprep.subr.mxu0 0.0
  %483 = vmatpush1.msra.mxu0 0.0
  %484 = vmatprep.subr.mxu0 0.0
  %485 = vmatpush1.msra.mxu0 0.0
  %486 = vmatprep.subr.mxu0 0.0
  %487 = vmatpush1.msra.mxu0 0.0
  %488 = vmatprep.subr.mxu0 0.0
  %489 = vmatpush1.msra.mxu0 0.0
  %490 = vmatprep.subr.mxu0 0.0
  %491 = vmatpush1.msra.mxu0 0.0
  %492 = vmatprep.subr.mxu0 0.0
  %493 = vmatpush1.msra.mxu0 0.0
  %494 = vmatprep.subr.mxu0 0.0
  %495 = vmatpush1.msra.mxu0 0.0
  %496 = vmatprep.subr.mxu0 0.0
  %497 = vmatpush1.msra.mxu0 0.0
  %498 = vmatprep.subr.mxu0 0.0
  %499 = vmatpush1.msra.mxu0 0.0
  %500 = vmatprep.subr.mxu0 0.0
  %501 = vmatpush1.msra.mxu0 0.0
  %502 = vmatprep.subr.mxu0 0.0
  %503 = vmatpush1.msra.mxu0 0.0
  %504 = vmatprep.subr.mxu0 0.0
  %505 = vmatpush1.msra.mxu0 0.0
  %506 = vmatprep.subr.mxu0 0.0
  %507 = vmatpush1.msra.mxu0 0.0
  %508 = vmatprep.subr.mxu0 0.0
  %509 = vmatpush1.msra.mxu0 0.0
  %510 = vmatprep.subr.mxu0 0.0
  %511 = vmatpush1.msra.mxu0 0.0
  %512 = vmatprep.subr.mxu0 0.0
  %513 = vmatpush1.msra.mxu0 0.0
  %514 = vmatprep.subr.mxu0 0.0
  %515 = vmatpush1.msra.mxu0 0.0
  %516 = vmatprep.subr.mxu0 0.0
  %517 = vmatpush1.msra.mxu0 0.0
  %518 = vmatprep.subr.mxu0 0.0
  %519 = vmatpush1.msra.mxu0 0.0
  %520 = vmatprep.subr.mxu0 0.0
  %521 = vmatpush1.msra.mxu0 0.0
  %522 = vmatprep.mubr.f32.mxu0 0.0
  %523 = vmatmul.mubr.f32.gmra.mrb[0].mxu0 %v456
  %v524 = vpop.f32.mrb[0].mxu0
  %v525 = vadd.f32 0.0, %v524
  %v526 = vpop.f32.mrb[0].mxu0
  %527 = vdwg.mxu0
  %v528 = vadd.f32 %v149, %v525
  %v529 = vxor.u32 %v528, 2147483648
  %v530 = vmul.f32 %v529, 1.442695
  %v531 = vpow.pop %v530
  %v532 = vadd.f32 %v531, 1.0
  %v533 = vrcp.pop %v532
  %v534 = vmul.f32 1.0, %v533
  %v535 = vtanh.pop %v528
  %v536 = vmul.f32 %v534, %v446
  %538 = vrot.lane.b32.xlu0 %v535, 96
  %v539 = vpop.permute.xlu0 %538
  %v541 = vmul.f32 %v534, %v539
  %543 = vrot.lane.b32.xlu0 %v541, 16
  %v544 = vpop.permute.xlu0 %543
  %v546 = vadd.f32 %v536, %v544
  %v547 = vtanh.pop %v546
  %549 = vrot.lane.b32.xlu0 %v547, 32
  %v550 = vpop.permute.xlu0 %549
  %v552 = vmul.f32 %v534, %v550
  %554 = vrot.lane.b32.xlu0 %v552, 80
  %v555 = vpop.permute.xlu0 %554
  %v556 = vsel %vm154, %v555, 0
  %558 = vmatprep.subr.mxu0 0.0
  %559 = vmatpush1.msra.mxu0 %v27
  %560 = vmatprep.subr.mxu0 0.0
  %561 = vmatpush1.msra.mxu0 %v28
  %562 = vmatprep.subr.mxu0 0.0
  %563 = vmatpush1.msra.mxu0 0.0
  %564 = vmatprep.subr.mxu0 0.0
  %565 = vmatpush1.msra.mxu0 0.0
  %566 = vmatprep.subr.mxu0 0.0
  %567 = vmatpush1.msra.mxu0 0.0
  %568 = vmatprep.subr.mxu0 0.0
  %569 = vmatpush1.msra.mxu0 0.0
  %570 = vmatprep.subr.mxu0 0.0
  %571 = vmatpush1.msra.mxu0 0.0
  %572 = vmatprep.subr.mxu0 0.0
  %573 = vmatpush1.msra.mxu0 0.0
  %574 = vmatprep.subr.mxu0 0.0
  %575 = vmatpush1.msra.mxu0 0.0
  %576 = vmatprep.subr.mxu0 0.0
  %577 = vmatpush1.msra.mxu0 0.0
  %578 = vmatprep.subr.mxu0 0.0
  %579 = vmatpush1.msra.mxu0 0.0
  %580 = vmatprep.subr.mxu0 0.0
  %581 = vmatpush1.msra.mxu0 0.0
  %582 = vmatprep.subr.mxu0 0.0
  %583 = vmatpush1.msra.mxu0 0.0
  %584 = vmatprep.subr.mxu0 0.0
  %585 = vmatpush1.msra.mxu0 0.0
  %586 = vmatprep.subr.mxu0 0.0
  %587 = vmatpush1.msra.mxu0 0.0
  %588 = vmatprep.subr.mxu0 0.0
  %589 = vmatpush1.msra.mxu0 0.0
  %590 = vmatprep.subr.mxu0 0.0
  %591 = vmatpush1.msra.mxu0 0.0
  %592 = vmatprep.subr.mxu0 0.0
  %593 = vmatpush1.msra.mxu0 0.0
  %594 = vmatprep.subr.mxu0 0.0
  %595 = vmatpush1.msra.mxu0 0.0
  %596 = vmatprep.subr.mxu0 0.0
  %597 = vmatpush1.msra.mxu0 0.0
  %598 = vmatprep.subr.mxu0 0.0
  %599 = vmatpush1.msra.mxu0 0.0
  %600 = vmatprep.subr.mxu0 0.0
  %601 = vmatpush1.msra.mxu0 0.0
  %602 = vmatprep.subr.mxu0 0.0
  %603 = vmatpush1.msra.mxu0 0.0
  %604 = vmatprep.subr.mxu0 0.0
  %605 = vmatpush1.msra.mxu0 0.0
  %606 = vmatprep.subr.mxu0 0.0
  %607 = vmatpush1.msra.mxu0 0.0
  %608 = vmatprep.subr.mxu0 0.0
  %609 = vmatpush1.msra.mxu0 0.0
  %610 = vmatprep.subr.mxu0 0.0
  %611 = vmatpush1.msra.mxu0 0.0
  %612 = vmatprep.subr.mxu0 0.0
  %613 = vmatpush1.msra.mxu0 0.0
  %614 = vmatprep.subr.mxu0 0.0
  %615 = vmatpush1.msra.mxu0 0.0
  %616 = vmatprep.subr.mxu0 0.0
  %617 = vmatpush1.msra.mxu0 0.0
  %618 = vmatprep.subr.mxu0 0.0
  %619 = vmatpush1.msra.mxu0 0.0
  %620 = vmatprep.subr.mxu0 0.0
  %621 = vmatpush1.msra.mxu0 0.0
  %622 = vmatprep.mubr.f32.mxu0 0.0
  %623 = vmatmul.mubr.f32.gmra.mrb[0].mxu0 %v556
  %v624 = vpop.f32.mrb[0].mxu0
  %v625 = vadd.f32 0.0, %v624
  %v626 = vpop.f32.mrb[0].mxu0
  %627 = vdwg.mxu0
  %v628 = vadd.f32 %v150, %v625
  %v629 = vxor.u32 %v628, 2147483648
  %v630 = vmul.f32 %v629, 1.442695
  %v631 = vpow.pop %v630
  %v632 = vadd.f32 %v631, 1.0
  %v633 = vrcp.pop %v632
  %v634 = vmul.f32 1.0, %v633
  %v635 = vtanh.pop %v628
  %v636 = vmul.f32 %v634, %v546
  %638 = vrot.lane.b32.xlu0 %v635, 96
  %v639 = vpop.permute.xlu0 %638
  %v641 = vmul.f32 %v634, %v639
  %643 = vrot.lane.b32.xlu0 %v641, 16
  %v644 = vpop.permute.xlu0 %643
  %v646 = vadd.f32 %v636, %v644
  %v647 = vtanh.pop %v646
  %649 = vrot.lane.b32.xlu0 %v647, 32
  %v650 = vpop.permute.xlu0 %649
  %v652 = vmul.f32 %v634, %v650
  %654 = vrot.lane.b32.xlu0 %v652, 80
  %v655 = vpop.permute.xlu0 %654
  %v656 = vsel %vm154, %v655, 0
  %658 = vmatprep.subr.mxu0 0.0
  %659 = vmatpush1.msra.mxu0 %v27
  %660 = vmatprep.subr.mxu0 0.0
  %661 = vmatpush1.msra.mxu0 %v28
  %662 = vmatprep.subr.mxu0 0.0
  %663 = vmatpush1.msra.mxu0 0.0
  %664 = vmatprep.subr.mxu0 0.0
  %665 = vmatpush1.msra.mxu0 0.0
  %666 = vmatprep.subr.mxu0 0.0
  %667 = vmatpush1.msra.mxu0 0.0
  %668 = vmatprep.subr.mxu0 0.0
  %669 = vmatpush1.msra.mxu0 0.0
  %670 = vmatprep.subr.mxu0 0.0
  %671 = vmatpush1.msra.mxu0 0.0
  %672 = vmatprep.subr.mxu0 0.0
  %673 = vmatpush1.msra.mxu0 0.0
  %674 = vmatprep.subr.mxu0 0.0
  %675 = vmatpush1.msra.mxu0 0.0
  %676 = vmatprep.subr.mxu0 0.0
  %677 = vmatpush1.msra.mxu0 0.0
  %678 = vmatprep.subr.mxu0 0.0
  %679 = vmatpush1.msra.mxu0 0.0
  %680 = vmatprep.subr.mxu0 0.0
  %681 = vmatpush1.msra.mxu0 0.0
  %682 = vmatprep.subr.mxu0 0.0
  %683 = vmatpush1.msra.mxu0 0.0
  %684 = vmatprep.subr.mxu0 0.0
  %685 = vmatpush1.msra.mxu0 0.0
  %686 = vmatprep.subr.mxu0 0.0
  %687 = vmatpush1.msra.mxu0 0.0
  %688 = vmatprep.subr.mxu0 0.0
  %689 = vmatpush1.msra.mxu0 0.0
  %690 = vmatprep.subr.mxu0 0.0
  %691 = vmatpush1.msra.mxu0 0.0
  %692 = vmatprep.subr.mxu0 0.0
  %693 = vmatpush1.msra.mxu0 0.0
  %694 = vmatprep.subr.mxu0 0.0
  %695 = vmatpush1.msra.mxu0 0.0
  %696 = vmatprep.subr.mxu0 0.0
  %697 = vmatpush1.msra.mxu0 0.0
  %698 = vmatprep.subr.mxu0 0.0
  %699 = vmatpush1.msra.mxu0 0.0
  %700 = vmatprep.subr.mxu0 0.0
  %701 = vmatpush1.msra.mxu0 0.0
  %702 = vmatprep.subr.mxu0 0.0
  %703 = vmatpush1.msra.mxu0 0.0
  %704 = vmatprep.subr.mxu0 0.0
  %705 = vmatpush1.msra.mxu0 0.0
  %706 = vmatprep.subr.mxu0 0.0
  %707 = vmatpush1.msra.mxu0 0.0
  %708 = vmatprep.subr.mxu0 0.0
  %709 = vmatpush1.msra.mxu0 0.0
  %710 = vmatprep.subr.mxu0 0.0
  %711 = vmatpush1.msra.mxu0 0.0
  %712 = vmatprep.subr.mxu0 0.0
  %713 = vmatpush1.msra.mxu0 0.0
  %714 = vmatprep.subr.mxu0 0.0
  %715 = vmatpush1.msra.mxu0 0.0
  %716 = vmatprep.subr.mxu0 0.0
  %717 = vmatpush1.msra.mxu0 0.0
  %718 = vmatprep.subr.mxu0 0.0
  %719 = vmatpush1.msra.mxu0 0.0
  %720 = vmatprep.subr.mxu0 0.0
  %721 = vmatpush1.msra.mxu0 0.0
  %722 = vmatprep.mubr.f32.mxu0 0.0
  %723 = vmatmul.mubr.f32.gmra.mrb[0].mxu0 %v656
  %v724 = vpop.f32.mrb[0].mxu0
  %v725 = vadd.f32 0.0, %v724
  %v726 = vpop.f32.mrb[0].mxu0
  %727 = vdwg.mxu0
  %v728 = vadd.f32 %v151, %v725
  %v729 = vxor.u32 %v728, 2147483648
  %v730 = vmul.f32 %v729, 1.442695
  %v731 = vpow.pop %v730
  %v732 = vadd.f32 %v731, 1.0
  %v733 = vrcp.pop %v732
  %v734 = vmul.f32 1.0, %v733
  %v735 = vtanh.pop %v728
  %v736 = vmul.f32 %v734, %v646
  %738 = vrot.lane.b32.xlu0 %v735, 96
  %v739 = vpop.permute.xlu0 %738
  %v741 = vmul.f32 %v734, %v739
  %743 = vrot.lane.b32.xlu0 %v741, 16
  %v744 = vpop.permute.xlu0 %743
  %v746 = vadd.f32 %v736, %v744
  %v747 = vtanh.pop %v746
  %749 = vrot.lane.b32.xlu0 %v747, 32
  %v750 = vpop.permute.xlu0 %749
  %v752 = vmul.f32 %v734, %v750
  %754 = vrot.lane.b32.xlu0 %v752, 80
  %v755 = vpop.permute.xlu0 %754
  %v756 = vsel %vm154, %v755, 0
  %758 = vmatprep.subr.mxu0 0.0
  %759 = vmatpush1.msra.mxu0 %v27
  %760 = vmatprep.subr.mxu0 0.0
  %761 = vmatpush1.msra.mxu0 %v28
  %762 = vmatprep.subr.mxu0 0.0
  %763 = vmatpush1.msra.mxu0 0.0
  %764 = vmatprep.subr.mxu0 0.0
  %765 = vmatpush1.msra.mxu0 0.0
  %766 = vmatprep.subr.mxu0 0.0
  %767 = vmatpush1.msra.mxu0 0.0
  %768 = vmatprep.subr.mxu0 0.0
  %769 = vmatpush1.msra.mxu0 0.0
  %770 = vmatprep.subr.mxu0 0.0
  %771 = vmatpush1.msra.mxu0 0.0
  %772 = vmatprep.subr.mxu0 0.0
  %773 = vmatpush1.msra.mxu0 0.0
  %774 = vmatprep.subr.mxu0 0.0
  %775 = vmatpush1.msra.mxu0 0.0
  %776 = vmatprep.subr.mxu0 0.0
  %777 = vmatpush1.msra.mxu0 0.0
  %778 = vmatprep.subr.mxu0 0.0
  %779 = vmatpush1.msra.mxu0 0.0
  %780 = vmatprep.subr.mxu0 0.0
  %781 = vmatpush1.msra.mxu0 0.0
  %782 = vmatprep.subr.mxu0 0.0
  %783 = vmatpush1.msra.mxu0 0.0
  %784 = vmatprep.subr.mxu0 0.0
  %785 = vmatpush1.msra.mxu0 0.0
  %786 = vmatprep.subr.mxu0 0.0
  %787 = vmatpush1.msra.mxu0 0.0
  %788 = vmatprep.subr.mxu0 0.0
  %789 = vmatpush1.msra.mxu0 0.0
  %790 = vmatprep.subr.mxu0 0.0
  %791 = vmatpush1.msra.mxu0 0.0
  %792 = vmatprep.subr.mxu0 0.0
  %793 = vmatpush1.msra.mxu0 0.0
  %794 = vmatprep.subr.mxu0 0.0
  %795 = vmatpush1.msra.mxu0 0.0
  %796 = vmatprep.subr.mxu0 0.0
  %797 = vmatpush1.msra.mxu0 0.0
  %798 = vmatprep.subr.mxu0 0.0
  %799 = vmatpush1.msra.mxu0 0.0
  %800 = vmatprep.subr.mxu0 0.0
  %801 = vmatpush1.msra.mxu0 0.0
  %802 = vmatprep.subr.mxu0 0.0
  %803 = vmatpush1.msra.mxu0 0.0
  %804 = vmatprep.subr.mxu0 0.0
  %805 = vmatpush1.msra.mxu0 0.0
  %806 = vmatprep.subr.mxu0 0.0
  %807 = vmatpush1.msra.mxu0 0.0
  %808 = vmatprep.subr.mxu0 0.0
  %809 = vmatpush1.msra.mxu0 0.0
  %810 = vmatprep.subr.mxu0 0.0
  %811 = vmatpush1.msra.mxu0 0.0
  %812 = vmatprep.subr.mxu0 0.0
  %813 = vmatpush1.msra.mxu0 0.0
  %814 = vmatprep.subr.mxu0 0.0
  %815 = vmatpush1.msra.mxu0 0.0
  %816 = vmatprep.subr.mxu0 0.0
  %817 = vmatpush1.msra.mxu0 0.0
  %818 = vmatprep.subr.mxu0 0.0
  %819 = vmatpush1.msra.mxu0 0.0
  %820 = vmatprep.subr.mxu0 0.0
  %821 = vmatpush1.msra.mxu0 0.0
  %822 = vmatprep.mubr.f32.mxu0 0.0
  %823 = vmatmul.mubr.f32.gmra.mrb[0].mxu0 %v756
  %v824 = vpop.f32.mrb[0].mxu0
  %v825 = vadd.f32 0.0, %v824
  %v826 = vpop.f32.mrb[0].mxu0
  %827 = vdwg.mxu0
  %v828 = vadd.f32 %v152, %v825
  %v829 = vxor.u32 %v828, 2147483648
  %v830 = vmul.f32 %v829, 1.442695
  %v831 = vpow.pop %v830
  %v832 = vadd.f32 %v831, 1.0
  %v833 = vrcp.pop %v832
  %v834 = vmul.f32 1.0, %v833
  %v835 = vtanh.pop %v828
  %v836 = vmul.f32 %v834, %v746
  %838 = vrot.lane.b32.xlu0 %v835, 96
  %v839 = vpop.permute.xlu0 %838
  %v841 = vmul.f32 %v834, %v839
  %843 = vrot.lane.b32.xlu0 %v841, 16
  %v844 = vpop.permute.xlu0 %843
  %v846 = vadd.f32 %v836, %v844
  %v847 = vtanh.pop %v846
  %849 = vrot.lane.b32.xlu0 %v847, 32
  %v850 = vpop.permute.xlu0 %849
  %v852 = vmul.f32 %v834, %v850
  %854 = vrot.lane.b32.xlu0 %v852, 80
  %v855 = vpop.permute.xlu0 %854
  %v856 = vsel %vm154, %v855, 0
  %858 = vmatprep.subr.mxu0 0.0
  %859 = vmatpush1.msra.mxu0 %v27
  %860 = vmatprep.subr.mxu0 0.0
  %861 = vmatpush1.msra.mxu0 %v28
  %862 = vmatprep.subr.mxu0 0.0
  %863 = vmatpush1.msra.mxu0 0.0
  %864 = vmatprep.subr.mxu0 0.0
  %865 = vmatpush1.msra.mxu0 0.0
  %866 = vmatprep.subr.mxu0 0.0
  %867 = vmatpush1.msra.mxu0 0.0
  %868 = vmatprep.subr.mxu0 0.0
  %869 = vmatpush1.msra.mxu0 0.0
  %870 = vmatprep.subr.mxu0 0.0
  %871 = vmatpush1.msra.mxu0 0.0
  %872 = vmatprep.subr.mxu0 0.0
  %873 = vmatpush1.msra.mxu0 0.0
  %874 = vmatprep.subr.mxu0 0.0
  %875 = vmatpush1.msra.mxu0 0.0
  %876 = vmatprep.subr.mxu0 0.0
  %877 = vmatpush1.msra.mxu0 0.0
  %878 = vmatprep.subr.mxu0 0.0
  %879 = vmatpush1.msra.mxu0 0.0
  %880 = vmatprep.subr.mxu0 0.0
  %881 = vmatpush1.msra.mxu0 0.0
  %882 = vmatprep.subr.mxu0 0.0
  %883 = vmatpush1.msra.mxu0 0.0
  %884 = vmatprep.subr.mxu0 0.0
  %885 = vmatpush1.msra.mxu0 0.0
  %886 = vmatprep.subr.mxu0 0.0
  %887 = vmatpush1.msra.mxu0 0.0
  %888 = vmatprep.subr.mxu0 0.0
  %889 = vmatpush1.msra.mxu0 0.0
  %890 = vmatprep.subr.mxu0 0.0
  %891 = vmatpush1.msra.mxu0 0.0
  %892 = vmatprep.subr.mxu0 0.0
  %893 = vmatpush1.msra.mxu0 0.0
  %894 = vmatprep.subr.mxu0 0.0
  %895 = vmatpush1.msra.mxu0 0.0
  %896 = vmatprep.subr.mxu0 0.0
  %897 = vmatpush1.msra.mxu0 0.0
  %898 = vmatprep.subr.mxu0 0.0
  %899 = vmatpush1.msra.mxu0 0.0
  %900 = vmatprep.subr.mxu0 0.0
  %901 = vmatpush1.msra.mxu0 0.0
  %902 = vmatprep.subr.mxu0 0.0
  %903 = vmatpush1.msra.mxu0 0.0
  %904 = vmatprep.subr.mxu0 0.0
  %905 = vmatpush1.msra.mxu0 0.0
  %906 = vmatprep.subr.mxu0 0.0
  %907 = vmatpush1.msra.mxu0 0.0
  %908 = vmatprep.subr.mxu0 0.0
  %909 = vmatpush1.msra.mxu0 0.0
  %910 = vmatprep.subr.mxu0 0.0
  %911 = vmatpush1.msra.mxu0 0.0
  %912 = vmatprep.subr.mxu0 0.0
  %913 = vmatpush1.msra.mxu0 0.0
  %914 = vmatprep.subr.mxu0 0.0
  %915 = vmatpush1.msra.mxu0 0.0
  %916 = vmatprep.subr.mxu0 0.0
  %917 = vmatpush1.msra.mxu0 0.0
  %918 = vmatprep.subr.mxu0 0.0
  %919 = vmatpush1.msra.mxu0 0.0
  %920 = vmatprep.subr.mxu0 0.0
  %921 = vmatpush1.msra.mxu0 0.0
  %922 = vmatprep.mubr.f32.mxu0 0.0
  %923 = vmatmul.mubr.f32.gmra.mrb[0].mxu0 %v856
  %v924 = vpop.f32.mrb[0].mxu0
  %v925 = vadd.f32 0.0, %v924
  %v926 = vpop.f32.mrb[0].mxu0
  %927 = vdwg.mxu0
  %v928 = vadd.f32 %v153, %v925
  %v929 = vxor.u32 %v928, 2147483648
  %v930 = vmul.f32 %v929, 1.442695
  %v931 = vpow.pop %v930
  %v932 = vadd.f32 %v931, 1.0
  %v933 = vrcp.pop %v932
  %v934 = vmul.f32 1.0, %v933
  %v935 = vtanh.pop %v928
  %v936 = vmul.f32 %v934, %v846
  %938 = vrot.lane.b32.xlu0 %v935, 96
  %v939 = vpop.permute.xlu0 %938
  %v941 = vmul.f32 %v934, %v939
  %943 = vrot.lane.b32.xlu0 %v941, 16
  %v944 = vpop.permute.xlu0 %943
  %v946 = vadd.f32 %v936, %v944
  %v947 = vtanh.pop %v946
  %949 = vrot.lane.b32.xlu0 %v947, 32
  %v950 = vpop.permute.xlu0 %949
  %v952 = vmul.f32 %v934, %v950
  %v953 = vld [vmem:[%s3] sm:$0x3]
  %v954 = vld [vmem:[%s3 + $0x8] sm:$0xff]
  %v955 = vld [vmem:[%s3 + $0x10] sm:$0xff]
  %v956 = vld [vmem:[%s3 + $0x18] sm:$0xff]
  %v957 = vld [vmem:[%s3 + $0x20] sm:$0xff]
  %v958 = vld [vmem:[%s3 + $0x28] sm:$0xff]
  %v959 = vld [vmem:[%s3 + $0x30] sm:$0xff]
  %v960 = vld [vmem:[%s6 + $0x1] sm:$0x1]
  %v961 = vld [vmem:[%s6 + $0x2] sm:$0x1]
  %v962 = vld [vmem:[%s1] sm:$0xff]
  %964 = vset.pattern.permute.xlu0 0
  %965 = vperm.xlu0 %964, %v962
  %v966 = vpop.permute.xlu0 %965
  %v968 = vlaneseq
  %v969 = vshrl.u32 %v968, 7
  %v970 = vsub.s32 0, %v969
  %v971 = vrot.slane %v953, %v970
  %v972 = vmul.f32 %v966, %v971
  %973 = vset.pattern.permute.xlu0 1
  %974 = vperm.xlu0 %973, %v962
  %v975 = vpop.permute.xlu0 %974
  %v977 = vlaneseq
  %v978 = vshrl.u32 %v977, 7
  %v979 = vsub.s32 1, %v978
  %v980 = vrot.slane %v953, %v979
  %v981 = vmul.f32 %v975, %v980
  %v982 = vadd.f32 %v972, %v981
  %984 = vrot.lane.b32.xlu0 %v952, 80
  %v985 = vpop.permute.xlu0 %984
  %v986 = vsel %vm154, %v985, 0
  %988 = vmatprep.subr.mxu0 0.0
  %989 = vmatpush1.msra.mxu0 %v954
  %990 = vmatprep.subr.mxu0 0.0
  %991 = vmatpush1.msra.mxu0 %v955
  %992 = vmatprep.subr.mxu0 0.0
  %993 = vmatpush1.msra.mxu0 0.0
  %994 = vmatprep.subr.mxu0 0.0
  %995 = vmatpush1.msra.mxu0 0.0
  %996 = vmatprep.subr.mxu0 0.0
  %997 = vmatpush1.msra.mxu0 0.0
  %998 = vmatprep.subr.mxu0 0.0
  %999 = vmatpush1.msra.mxu0 0.0
  %1000 = vmatprep.subr.mxu0 0.0
  %1001 = vmatpush1.msra.mxu0 0.0
  %1002 = vmatprep.subr.mxu0 0.0
  %1003 = vmatpush1.msra.mxu0 0.0
  %1004 = vmatprep.subr.mxu0 0.0
  %1005 = vmatpush1.msra.mxu0 0.0
  %1006 = vmatprep.subr.mxu0 0.0
  %1007 = vmatpush1.msra.mxu0 0.0
  %1008 = vmatprep.subr.mxu0 0.0
  %1009 = vmatpush1.msra.mxu0 0.0
  %1010 = vmatprep.subr.mxu0 0.0
  %1011 = vmatpush1.msra.mxu0 0.0
  %1012 = vmatprep.subr.mxu0 0.0
  %1013 = vmatpush1.msra.mxu0 0.0
  %1014 = vmatprep.subr.mxu0 0.0
  %1015 = vmatpush1.msra.mxu0 0.0
  %1016 = vmatprep.subr.mxu0 0.0
  %1017 = vmatpush1.msra.mxu0 0.0
  %1018 = vmatprep.subr.mxu0 0.0
  %1019 = vmatpush1.msra.mxu0 0.0
  %1020 = vmatprep.subr.mxu0 0.0
  %1021 = vmatpush1.msra.mxu0 0.0
  %1022 = vmatprep.subr.mxu0 0.0
  %1023 = vmatpush1.msra.mxu0 0.0
  %1024 = vmatprep.subr.mxu0 0.0
  %1025 = vmatpush1.msra.mxu0 0.0
  %1026 = vmatprep.subr.mxu0 0.0
  %1027 = vmatpush1.msra.mxu0 0.0
  %1028 = vmatprep.subr.mxu0 0.0
  %1029 = vmatpush1.msra.mxu0 0.0
  %1030 = vmatprep.subr.mxu0 0.0
  %1031 = vmatpush1.msra.mxu0 0.0
  %1032 = vmatprep.subr.mxu0 0.0
  %1033 = vmatpush1.msra.mxu0 0.0
  %1034 = vmatprep.subr.mxu0 0.0
  %1035 = vmatpush1.msra.mxu0 0.0
  %1036 = vmatprep.subr.mxu0 0.0
  %1037 = vmatpush1.msra.mxu0 0.0
  %1038 = vmatprep.subr.mxu0 0.0
  %1039 = vmatpush1.msra.mxu0 0.0
  %1040 = vmatprep.subr.mxu0 0.0
  %1041 = vmatpush1.msra.mxu0 0.0
  %1042 = vmatprep.subr.mxu0 0.0
  %1043 = vmatpush1.msra.mxu0 0.0
  %1044 = vmatprep.subr.mxu0 0.0
  %1045 = vmatpush1.msra.mxu0 0.0
  %1046 = vmatprep.subr.mxu0 0.0
  %1047 = vmatpush1.msra.mxu0 0.0
  %1048 = vmatprep.subr.mxu0 0.0
  %1049 = vmatpush1.msra.mxu0 0.0
  %1050 = vmatprep.subr.mxu0 0.0
  %1051 = vmatpush1.msra.mxu0 0.0
  %1052 = vmatprep.mubr.f32.mxu0 0.0
  %1053 = vmatmul.mubr.f32.gmra.mrb[0].mxu0 %v986
  %v1054 = vpop.f32.mrb[0].mxu0
  %v1055 = vadd.f32 0.0, %v1054
  %v1056 = vpop.f32.mrb[0].mxu0
  %1057 = vdwg.mxu0
  %v1058 = vadd.f32 %v982, %v1055
  %v1059 = vlaneseq
  %v1060 = vshrl.u32 %v1059, 7
  %v1061 = vsub.s32 0, %v1060
  %v1062 = vrot.slane %v960, %v1061
  %v1063 = vadd.f32 %v1058, %v1062
  %v1065 = vcombine.high %v982, %v982
  %v1067 = vunpack.c.l.s4 1966171168
  %v1068 = vunpack.c.0.s8 %v1067
  %v1069 = vlaneseq
  %v1070 = vshrl.u32 %v1069, 7
  %v1071 = vsub.s32 %v1068, %v1070
  %v1072 = vrot.slane %v982, %v1071
  %v1074 = vunpack.c.l.s4 1966171168
  %v1075 = vunpack.c.0.s8 %v1074
  %v1076 = vlaneseq
  %v1077 = vshrl.u32 %v1076, 7
  %v1078 = vsub.s32 %v1075, %v1077
  %v1079 = vrot.slane %v1065, %v1078
  %v1080 = vcombine.high %v1072, %v1072
  %v1081 = vcombine.high %v1079, %v1079
  %v1083 = vunpack.c.l.s4 1966171168
  %v1084 = vunpack.c.0.s8 %v1083
  %v1085 = vlaneseq
  %v1086 = vshrl.u32 %v1085, 7
  %v1087 = vsub.s32 %v1084, %v1086
  %v1088 = vrot.slane %v1072, %v1087
  %v1090 = vunpack.c.l.s4 1966171168
  %v1091 = vunpack.c.0.s8 %v1090
  %v1092 = vlaneseq
  %v1093 = vshrl.u32 %v1092, 7
  %v1094 = vsub.s32 %v1091, %v1093
  %v1095 = vrot.slane %v1079, %v1094
  %v1097 = vunpack.c.l.s4 1966171168
  %v1098 = vunpack.c.0.s8 %v1097
  %v1099 = vlaneseq
  %v1100 = vshrl.u32 %v1099, 7
  %v1101 = vsub.s32 %v1098, %v1100
  %v1102 = vrot.slane %v1080, %v1101
  %v1104 = vunpack.c.l.s4 1966171168
  %v1105 = vunpack.c.0.s8 %v1104
  %v1106 = vlaneseq
  %v1107 = vshrl.u32 %v1106, 7
  %v1108 = vsub.s32 %v1105, %v1107
  %v1109 = vrot.slane %v1081, %v1108
  %v1110 = vcombine.high %v1088, %v1088
  %v1111 = vcombine.high %v1095, %v1095
  %v1112 = vcombine.high %v1102, %v1102
  %v1113 = vcombine.high %v1109, %v1109
  %v1114 = vlaneseq
  %v1115 = vshrl.u32 %v1114, 7
  %v1116 = vsub.s32 0, %v1115
  %v1117 = vrot.slane %v1088, %v1116
  %v1118 = vlaneseq
  %v1119 = vshrl.u32 %v1118, 7
  %v1120 = vsub.s32 0, %v1119
  %v1121 = vrot.slane %v1102, %v1120
  %v1122 = vlaneseq
  %v1123 = vshrl.u32 %v1122, 7
  %v1124 = vsub.s32 0, %v1123
  %v1125 = vrot.slane %v1110, %v1124
  %v1126 = vlaneseq
  %v1127 = vshrl.u32 %v1126, 7
  %v1128 = vsub.s32 0, %v1127
  %v1129 = vrot.slane %v1112, %v1128
  %v1130 = vlaneseq
  %v1131 = vshrl.u32 %v1130, 7
  %v1132 = vsub.s32 0, %v1131
  %v1133 = vrot.slane %v1095, %v1132
  %v1134 = vlaneseq
  %v1135 = vshrl.u32 %v1134, 7
  %v1136 = vsub.s32 0, %v1135
  %v1137 = vrot.slane %v1109, %v1136
  %v1138 = vlaneseq
  %v1139 = vshrl.u32 %v1138, 7
  %v1140 = vsub.s32 0, %v1139
  %v1141 = vrot.slane %v1111, %v1140
  %v1142 = vlaneseq
  %v1143 = vshrl.u32 %v1142, 7
  %v1144 = vsub.s32 0, %v1143
  %v1145 = vrot.slane %v1113, %v1144
  %v1154 = vsub.f32 %v1063, %v1117
  %v1155 = vsub.f32 %v1063, %v1121
  %v1156 = vsub.f32 %v1063, %v1125
  %v1157 = vsub.f32 %v1063, %v1129
  %v1158 = vsub.f32 %v1063, %v1133
  %v1159 = vsub.f32 %v1063, %v1137
  %v1160 = vsub.f32 %v1063, %v1141
  %v1161 = vsub.f32 %v1063, %v1145
  %v1162 = vmax.f32 %v1154, 0.0
  %v1163 = vmax.f32 %v1155, 0.0
  %v1164 = vmax.f32 %v1156, 0.0
  %v1165 = vmax.f32 %v1157, 0.0
  %v1166 = vmax.f32 %v1158, 0.0
  %v1167 = vmax.f32 %v1159, 0.0
  %v1168 = vmax.f32 %v1160, 0.0
  %v1169 = vmax.f32 %v1161, 0.0
  %v1170 = vlaneseq
  %v1171 = vshrl.u32 %v1170, 7
  %v1172 = vsub.s32 0, %v1171
  %v1173 = vrot.slane %v961, %v1172
  %vm1174 = vcmask 261120
  %v1176 = vsel %vm1174, %v1162, 0
  %v1179 = vsel %vm1174, %v1163, 0
  %v1182 = vsel %vm1174, %v1164, 0
  %v1185 = vsel %vm1174, %v1165, 0
  %v1188 = vsel %vm1174, %v1166, 0
  %v1191 = vsel %vm1174, %v1167, 0
  %v1194 = vsel %vm1174, %v1168, 0
  %v1197 = vsel %vm1174, %v1169, 0
  %1199 = vmatprep.subr.mxu0 0.0
  %1200 = vmatpush1.msra.mxu0 %v956
  %1201 = vmatprep.subr.mxu0 0.0
  %1202 = vmatpush1.msra.mxu0 %v957
  %1203 = vmatprep.subr.mxu0 0.0
  %1204 = vmatpush1.msra.mxu0 %v958
  %1205 = vmatprep.subr.mxu0 0.0
  %1206 = vmatpush1.msra.mxu0 %v959
  %1207 = vmatprep.subr.mxu0 0.0
  %1208 = vmatpush1.msra.mxu0 0.0
  %1209 = vmatprep.subr.mxu0 0.0
  %1210 = vmatpush1.msra.mxu0 0.0
  %1211 = vmatprep.subr.mxu0 0.0
  %1212 = vmatpush1.msra.mxu0 0.0
  %1213 = vmatprep.subr.mxu0 0.0
  %1214 = vmatpush1.msra.mxu0 0.0
  %1215 = vmatprep.subr.mxu0 0.0
  %1216 = vmatpush1.msra.mxu0 0.0
  %1217 = vmatprep.subr.mxu0 0.0
  %1218 = vmatpush1.msra.mxu0 0.0
  %1219 = vmatprep.subr.mxu0 0.0
  %1220 = vmatpush1.msra.mxu0 0.0
  %1221 = vmatprep.subr.mxu0 0.0
  %1222 = vmatpush1.msra.mxu0 0.0
  %1223 = vmatprep.subr.mxu0 0.0
  %1224 = vmatpush1.msra.mxu0 0.0
  %1225 = vmatprep.subr.mxu0 0.0
  %1226 = vmatpush1.msra.mxu0 0.0
  %1227 = vmatprep.subr.mxu0 0.0
  %1228 = vmatpush1.msra.mxu0 0.0
  %1229 = vmatprep.subr.mxu0 0.0
  %1230 = vmatpush1.msra.mxu0 0.0
  %1231 = vmatprep.subr.mxu0 0.0
  %1232 = vmatpush1.msra.mxu0 0.0
  %1233 = vmatprep.subr.mxu0 0.0
  %1234 = vmatpush1.msra.mxu0 0.0
  %1235 = vmatprep.subr.mxu0 0.0
  %1236 = vmatpush1.msra.mxu0 0.0
  %1237 = vmatprep.subr.mxu0 0.0
  %1238 = vmatpush1.msra.mxu0 0.0
  %1239 = vmatprep.subr.mxu0 0.0
  %1240 = vmatpush1.msra.mxu0 0.0
  %1241 = vmatprep.subr.mxu0 0.0
  %1242 = vmatpush1.msra.mxu0 0.0
  %1243 = vmatprep.subr.mxu0 0.0
  %1244 = vmatpush1.msra.mxu0 0.0
  %1245 = vmatprep.subr.mxu0 0.0
  %1246 = vmatpush1.msra.mxu0 0.0
  %1247 = vmatprep.subr.mxu0 0.0
  %1248 = vmatpush1.msra.mxu0 0.0
  %1249 = vmatprep.subr.mxu0 0.0
  %1250 = vmatpush1.msra.mxu0 0.0
  %1251 = vmatprep.subr.mxu0 0.0
  %1252 = vmatpush1.msra.mxu0 0.0
  %1253 = vmatprep.subr.mxu0 0.0
  %1254 = vmatpush1.msra.mxu0 0.0
  %1255 = vmatprep.subr.mxu0 0.0
  %1256 = vmatpush1.msra.mxu0 0.0
  %1257 = vmatprep.subr.mxu0 0.0
  %1258 = vmatpush1.msra.mxu0 0.0
  %1259 = vmatprep.subr.mxu0 0.0
  %1260 = vmatpush1.msra.mxu0 0.0
  %1261 = vmatprep.subr.mxu0 0.0
  %1262 = vmatpush1.msra.mxu0 0.0
  %1263 = vmatprep.mubr.f32.mxu0 0.0
  %1264 = vmatmul.mubr.f32.gmra.mrb[0].mxu0 %v1176
  %v1265 = vpop.f32.mrb[0].mxu0
  %v1266 = vadd.f32 %v1173, %v1265
  %v1267 = vpop.f32.mrb[0].mxu0
  %1268 = vmatprep.mubr.f32.mxu0 0.0
  %1269 = vmatmul.mubr.f32.gmra.mrb[0].mxu0 %v1179
  %v1270 = vpop.f32.mrb[0].mxu0
  %v1271 = vadd.f32 %v1173, %v1270
  %v1272 = vpop.f32.mrb[0].mxu0
  %1273 = vmatprep.mubr.f32.mxu0 0.0
  %1274 = vmatmul.mubr.f32.gmra.mrb[0].mxu0 %v1182
  %v1275 = vpop.f32.mrb[0].mxu0
  %v1276 = vadd.f32 %v1173, %v1275
  %v1277 = vpop.f32.mrb[0].mxu0
  %1278 = vmatprep.mubr.f32.mxu0 0.0
  %1279 = vmatmul.mubr.f32.gmra.mrb[0].mxu0 %v1185
  %v1280 = vpop.f32.mrb[0].mxu0
  %v1281 = vadd.f32 %v1173, %v1280
  %v1282 = vpop.f32.mrb[0].mxu0
  %1283 = vmatprep.mubr.f32.mxu0 0.0
  %1284 = vmatmul.mubr.f32.gmra.mrb[0].mxu0 %v1188
  %v1285 = vpop.f32.mrb[0].mxu0
  %v1286 = vadd.f32 %v1173, %v1285
  %v1287 = vpop.f32.mrb[0].mxu0
  %1288 = vmatprep.mubr.f32.mxu0 0.0
  %1289 = vmatmul.mubr.f32.gmra.mrb[0].mxu0 %v1191
  %v1290 = vpop.f32.mrb[0].mxu0
  %v1291 = vadd.f32 %v1173, %v1290
  %v1292 = vpop.f32.mrb[0].mxu0
  %1293 = vmatprep.mubr.f32.mxu0 0.0
  %1294 = vmatmul.mubr.f32.gmra.mrb[0].mxu0 %v1194
  %v1295 = vpop.f32.mrb[0].mxu0
  %v1296 = vadd.f32 %v1173, %v1295
  %v1297 = vpop.f32.mrb[0].mxu0
  %1298 = vmatprep.mubr.f32.mxu0 0.0
  %1299 = vmatmul.mubr.f32.gmra.mrb[0].mxu0 %v1197
  %v1300 = vpop.f32.mrb[0].mxu0
  %v1301 = vadd.f32 %v1173, %v1300
  %v1302 = vpop.f32.mrb[0].mxu0
  %1303 = vdwg.mxu0
  %v1304 = vmax.f32 %v1266, 0.0
  %v1305 = vmax.f32 %v1271, 0.0
  %v1306 = vmax.f32 %v1276, 0.0
  %v1307 = vmax.f32 %v1281, 0.0
  %v1308 = vmax.f32 %v1286, 0.0
  %v1309 = vmax.f32 %v1291, 0.0
  %v1310 = vmax.f32 %v1296, 0.0
  %v1311 = vmax.f32 %v1301, 0.0
  %v1312 = vld [vmem:[%s2] sm:$0xff]
  %v1313 = vld [vmem:[%s2 + $0x8] sm:$0xff]
  %v1314 = vld [vmem:[%s2 + $0x10] sm:$0xff]
  %v1315 = vld [vmem:[%s2 + $0x18] sm:$0xff]
  %v1316 = vld [vmem:[%s2 + $0x20] sm:$0xff]
  %v1317 = vld [vmem:[%s2 + $0x28] sm:$0xff]
  %v1318 = vld [vmem:[%s2 + $0x30] sm:$0xff]
  %v1319 = vld [vmem:[%s2 + $0x38] sm:$0xff]
  %1321 = vset.pattern.permute.xlu0 0
  %1322 = vperm.xlu0 %1321, %v1312
  %v1323 = vpop.permute.xlu0 %1322
  %1326 = vset.pattern.permute.xlu0 0
  %1327 = vperm.xlu0 %1326, %v1313
  %v1328 = vpop.permute.xlu0 %1327
  %1331 = vset.pattern.permute.xlu0 0
  %1332 = vperm.xlu0 %1331, %v1314
  %v1333 = vpop.permute.xlu0 %1332
  %1336 = vset.pattern.permute.xlu0 0
  %1337 = vperm.xlu0 %1336, %v1315
  %v1338 = vpop.permute.xlu0 %1337
  %1341 = vset.pattern.permute.xlu0 0
  %1342 = vperm.xlu0 %1341, %v1316
  %v1343 = vpop.permute.xlu0 %1342
  %1346 = vset.pattern.permute.xlu0 0
  %1347 = vperm.xlu0 %1346, %v1317
  %v1348 = vpop.permute.xlu0 %1347
  %1351 = vset.pattern.permute.xlu0 0
  %1352 = vperm.xlu0 %1351, %v1318
  %v1353 = vpop.permute.xlu0 %1352
  %1356 = vset.pattern.permute.xlu0 0
  %1357 = vperm.xlu0 %1356, %v1319
  %v1358 = vpop.permute.xlu0 %1357
  %v1360 = vadd.f32 %v1304, %v1323
  %v1361 = vadd.f32 %v1305, %v1328
  %v1362 = vadd.f32 %v1306, %v1333
  %v1363 = vadd.f32 %v1307, %v1338
  %v1364 = vadd.f32 %v1308, %v1343
  %v1365 = vadd.f32 %v1309, %v1348
  %v1366 = vadd.f32 %v1310, %v1353
  %v1367 = vadd.f32 %v1311, %v1358
  %v1368 = vsel %vm1174, %v1360, -inf
  %v1369 = vrot.slane %v1368, 4
  %v1370 = vmax.f32 %v1368, %v1369
  %v1371 = vrot.slane %v1370, 2
  %v1372 = vmax.f32 %v1370, %v1371
  %v1373 = vrot.slane %v1372, 1
  %v1374 = vmax.f32 %v1372, %v1373
  %v1375 = vsel %vm1174, %v1361, -inf
  %v1376 = vrot.slane %v1375, 4
  %v1377 = vmax.f32 %v1375, %v1376
  %v1378 = vrot.slane %v1377, 2
  %v1379 = vmax.f32 %v1377, %v1378
  %v1380 = vrot.slane %v1379, 1
  %v1381 = vmax.f32 %v1379, %v1380
  %v1382 = vsel %vm1174, %v1362, -inf
  %v1383 = vrot.slane %v1382, 4
  %v1384 = vmax.f32 %v1382, %v1383
  %v1385 = vrot.slane %v1384, 2
  %v1386 = vmax.f32 %v1384, %v1385
  %v1387 = vrot.slane %v1386, 1
  %v1388 = vmax.f32 %v1386, %v1387
  %v1389 = vsel %vm1174, %v1363, -inf
  %v1390 = vrot.slane %v1389, 4
  %v1391 = vmax.f32 %v1389, %v1390
  %v1392 = vrot.slane %v1391, 2
  %v1393 = vmax.f32 %v1391, %v1392
  %v1394 = vrot.slane %v1393, 1
  %v1395 = vmax.f32 %v1393, %v1394
  %v1396 = vsel %vm1174, %v1364, -inf
  %v1397 = vrot.slane %v1396, 4
  %v1398 = vmax.f32 %v1396, %v1397
  %v1399 = vrot.slane %v1398, 2
  %v1400 = vmax.f32 %v1398, %v1399
  %v1401 = vrot.slane %v1400, 1
  %v1402 = vmax.f32 %v1400, %v1401
  %v1403 = vsel %vm1174, %v1365, -inf
  %v1404 = vrot.slane %v1403, 4
  %v1405 = vmax.f32 %v1403, %v1404
  %v1406 = vrot.slane %v1405, 2
  %v1407 = vmax.f32 %v1405, %v1406
  %v1408 = vrot.slane %v1407, 1
  %v1409 = vmax.f32 %v1407, %v1408
  %v1410 = vsel %vm1174, %v1366, -inf
  %v1411 = vrot.slane %v1410, 4
  %v1412 = vmax.f32 %v1410, %v1411
  %v1413 = vrot.slane %v1412, 2
  %v1414 = vmax.f32 %v1412, %v1413
  %v1415 = vrot.slane %v1414, 1
  %v1416 = vmax.f32 %v1414, %v1415
  %v1417 = vsel %vm1174, %v1367, -inf
  %v1418 = vrot.slane %v1417, 4
  %v1419 = vmax.f32 %v1417, %v1418
  %v1420 = vrot.slane %v1419, 2
  %v1421 = vmax.f32 %v1419, %v1420
  %v1422 = vrot.slane %v1421, 1
  %v1423 = vmax.f32 %v1421, %v1422
  %v1424 = vld [vmem:[%s3 + $0x38] sm:$0xff]
  %v1425 = vld [vmem:[%s3 + $0x40] sm:$0xff]
  %v1426 = vld [vmem:[%s3 + $0x48] sm:$0xff]
  %v1427 = vld [vmem:[%s3 + $0x50] sm:$0xff]
  %v1428 = vld [vmem:[%s3 + $0x58] sm:$0xff]
  %v1429 = vld [vmem:[%s3 + $0x60] sm:$0xff]
  %v1430 = vld [vmem:[%s3 + $0x68] sm:$0xff]
  %v1431 = vld [vmem:[%s3 + $0x70] sm:$0xff]
  %v1432 = vld [vmem:[%s3 + $0x78] sm:$0xff]
  %v1433 = vld [vmem:[%s3 + $0x80] sm:$0xff]
  %v1434 = vld [vmem:[%s6 + $0x3] sm:$0x1]
  %v1435 = vld [vmem:[%s6 + $0x4] sm:$0x1]
  %v1436 = vld [vmem:[%s6 + $0x5] sm:$0x1]
  %v1437 = vld [vmem:[%s6 + $0x6] sm:$0x1]
  %v1438 = vld [vmem:[%s6 + $0x7] sm:$0x1]
  %v1439 = vld [vmem:[%s6 + $0x8] sm:$0x1]
  %vm1448 = vcmask 1041409
  %v1449 = vsel %vm1448, %v1381, %v1374
  %vm1450 = vcmask 1042434
  %v1451 = vsel %vm1450, %v1388, %v1449
  %vm1452 = vcmask 1043459
  %v1453 = vsel %vm1452, %v1395, %v1451
  %vm1454 = vcmask 1044484
  %v1455 = vsel %vm1454, %v1402, %v1453
  %vm1456 = vcmask 1045509
  %v1457 = vsel %vm1456, %v1409, %v1455
  %vm1458 = vcmask 1046534
  %v1459 = vsel %vm1458, %v1416, %v1457
  %vm1460 = vcmask 1047559
  %v1461 = vsel %vm1460, %v1423, %v1459
  %v1462 = vsel %vm1174, %v1461, 0
  %1464 = vmatprep.subr.mxu0 0.0
  %1465 = vmatpush1.msra.mxu0 %v1426
  %1466 = vmatprep.subr.mxu0 0.0
  %1467 = vmatpush1.msra.mxu0 %v1427
  %1468 = vmatprep.subr.mxu0 0.0
  %1469 = vmatpush1.msra.mxu0 %v1428
  %1470 = vmatprep.subr.mxu0 0.0
  %1471 = vmatpush1.msra.mxu0 %v1429
  %1472 = vmatprep.subr.mxu0 0.0
  %1473 = vmatpush1.msra.mxu0 0.0
  %1474 = vmatprep.subr.mxu0 0.0
  %1475 = vmatpush1.msra.mxu0 0.0
  %1476 = vmatprep.subr.mxu0 0.0
  %1477 = vmatpush1.msra.mxu0 0.0
  %1478 = vmatprep.subr.mxu0 0.0
  %1479 = vmatpush1.msra.mxu0 0.0
  %1480 = vmatprep.subr.mxu0 0.0
  %1481 = vmatpush1.msra.mxu0 0.0
  %1482 = vmatprep.subr.mxu0 0.0
  %1483 = vmatpush1.msra.mxu0 0.0
  %1484 = vmatprep.subr.mxu0 0.0
  %1485 = vmatpush1.msra.mxu0 0.0
  %1486 = vmatprep.subr.mxu0 0.0
  %1487 = vmatpush1.msra.mxu0 0.0
  %1488 = vmatprep.subr.mxu0 0.0
  %1489 = vmatpush1.msra.mxu0 0.0
  %1490 = vmatprep.subr.mxu0 0.0
  %1491 = vmatpush1.msra.mxu0 0.0
  %1492 = vmatprep.subr.mxu0 0.0
  %1493 = vmatpush1.msra.mxu0 0.0
  %1494 = vmatprep.subr.mxu0 0.0
  %1495 = vmatpush1.msra.mxu0 0.0
  %1496 = vmatprep.subr.mxu0 0.0
  %1497 = vmatpush1.msra.mxu0 0.0
  %1498 = vmatprep.subr.mxu0 0.0
  %1499 = vmatpush1.msra.mxu0 0.0
  %1500 = vmatprep.subr.mxu0 0.0
  %1501 = vmatpush1.msra.mxu0 0.0
  %1502 = vmatprep.subr.mxu0 0.0
  %1503 = vmatpush1.msra.mxu0 0.0
  %1504 = vmatprep.subr.mxu0 0.0
  %1505 = vmatpush1.msra.mxu0 0.0
  %1506 = vmatprep.subr.mxu0 0.0
  %1507 = vmatpush1.msra.mxu0 0.0
  %1508 = vmatprep.subr.mxu0 0.0
  %1509 = vmatpush1.msra.mxu0 0.0
  %1510 = vmatprep.subr.mxu0 0.0
  %1511 = vmatpush1.msra.mxu0 0.0
  %1512 = vmatprep.subr.mxu0 0.0
  %1513 = vmatpush1.msra.mxu0 0.0
  %1514 = vmatprep.subr.mxu0 0.0
  %1515 = vmatpush1.msra.mxu0 0.0
  %1516 = vmatprep.subr.mxu0 0.0
  %1517 = vmatpush1.msra.mxu0 0.0
  %1518 = vmatprep.subr.mxu0 0.0
  %1519 = vmatpush1.msra.mxu0 0.0
  %1520 = vmatprep.subr.mxu0 0.0
  %1521 = vmatpush1.msra.mxu0 0.0
  %1522 = vmatprep.subr.mxu0 0.0
  %1523 = vmatpush1.msra.mxu0 0.0
  %1524 = vmatprep.subr.mxu0 0.0
  %1525 = vmatpush1.msra.mxu0 0.0
  %1526 = vmatprep.subr.mxu0 0.0
  %1527 = vmatpush1.msra.mxu0 0.0
  %1528 = vmatprep.mubr.f32.mxu0 0.0
  %1529 = vmatmul.mubr.f32.gmra.mrb[0].mxu0 %v1462
  %v1530 = vpop.f32.mrb[0].mxu0
  %v1531 = vadd.f32 0.0, %v1530
  %v1532 = vpop.f32.mrb[0].mxu0
  %1533 = vdwg.mxu0
  %1534 = vmatprep.subr.mxu0 0.0
  %1535 = vmatpush1.msra.mxu0 %v1424
  %1536 = vmatprep.subr.mxu0 0.0
  %1537 = vmatpush1.msra.mxu0 %v1425
  %1538 = vmatprep.subr.mxu0 0.0
  %1539 = vmatpush1.msra.mxu0 0.0
  %1540 = vmatprep.subr.mxu0 0.0
  %1541 = vmatpush1.msra.mxu0 0.0
  %1542 = vmatprep.subr.mxu0 0.0
  %1543 = vmatpush1.msra.mxu0 0.0
  %1544 = vmatprep.subr.mxu0 0.0
  %1545 = vmatpush1.msra.mxu0 0.0
  %1546 = vmatprep.subr.mxu0 0.0
  %1547 = vmatpush1.msra.mxu0 0.0
  %1548 = vmatprep.subr.mxu0 0.0
  %1549 = vmatpush1.msra.mxu0 0.0
  %1550 = vmatprep.subr.mxu0 0.0
  %1551 = vmatpush1.msra.mxu0 0.0
  %1552 = vmatprep.subr.mxu0 0.0
  %1553 = vmatpush1.msra.mxu0 0.0
  %1554 = vmatprep.subr.mxu0 0.0
  %1555 = vmatpush1.msra.mxu0 0.0
  %1556 = vmatprep.subr.mxu0 0.0
  %1557 = vmatpush1.msra.mxu0 0.0
  %1558 = vmatprep.subr.mxu0 0.0
  %1559 = vmatpush1.msra.mxu0 0.0
  %1560 = vmatprep.subr.mxu0 0.0
  %1561 = vmatpush1.msra.mxu0 0.0
  %1562 = vmatprep.subr.mxu0 0.0
  %1563 = vmatpush1.msra.mxu0 0.0
  %1564 = vmatprep.subr.mxu0 0.0
  %1565 = vmatpush1.msra.mxu0 0.0
  %1566 = vmatprep.subr.mxu0 0.0
  %1567 = vmatpush1.msra.mxu0 0.0
  %1568 = vmatprep.subr.mxu0 0.0
  %1569 = vmatpush1.msra.mxu0 0.0
  %1570 = vmatprep.subr.mxu0 0.0
  %1571 = vmatpush1.msra.mxu0 0.0
  %1572 = vmatprep.subr.mxu0 0.0
  %1573 = vmatpush1.msra.mxu0 0.0
  %1574 = vmatprep.subr.mxu0 0.0
  %1575 = vmatpush1.msra.mxu0 0.0
  %1576 = vmatprep.subr.mxu0 0.0
  %1577 = vmatpush1.msra.mxu0 0.0
  %1578 = vmatprep.subr.mxu0 0.0
  %1579 = vmatpush1.msra.mxu0 0.0
  %1580 = vmatprep.subr.mxu0 0.0
  %1581 = vmatpush1.msra.mxu0 0.0
  %1582 = vmatprep.subr.mxu0 0.0
  %1583 = vmatpush1.msra.mxu0 0.0
  %1584 = vmatprep.subr.mxu0 0.0
  %1585 = vmatpush1.msra.mxu0 0.0
  %1586 = vmatprep.subr.mxu0 0.0
  %1587 = vmatpush1.msra.mxu0 0.0
  %1588 = vmatprep.subr.mxu0 0.0
  %1589 = vmatpush1.msra.mxu0 0.0
  %1590 = vmatprep.subr.mxu0 0.0
  %1591 = vmatpush1.msra.mxu0 0.0
  %1592 = vmatprep.subr.mxu0 0.0
  %1593 = vmatpush1.msra.mxu0 0.0
  %1594 = vmatprep.subr.mxu0 0.0
  %1595 = vmatpush1.msra.mxu0 0.0
  %1596 = vmatprep.subr.mxu0 0.0
  %1597 = vmatpush1.msra.mxu0 0.0
  %1598 = vmatprep.mubr.f32.mxu0 0.0
  %1599 = vmatmul.mubr.f32.gmra.mrb[0].mxu0 %v986
  %v1600 = vpop.f32.mrb[0].mxu0
  %v1601 = vadd.f32 %v1531, %v1600
  %v1602 = vpop.f32.mrb[0].mxu0
  %1603 = vdwg.mxu0
  %v1604 = vlaneseq
  %v1605 = vshrl.u32 %v1604, 7
  %v1606 = vsub.s32 0, %v1605
  %v1607 = vrot.slane %v1434, %v1606
  %v1608 = vadd.f32 %v1601, %v1607
  %v1609 = vsel %vm1174, %v1608, 0.0
  %v1610 = vrot.slane %v1609, 4
  %v1611 = vadd.f32 %v1609, %v1610
  %v1612 = vrot.slane %v1611, 2
  %v1613 = vadd.f32 %v1611, %v1612
  %v1614 = vrot.slane %v1613, 1
  %v1615 = vadd.f32 %v1613, %v1614
  %v1616 = vrcp.pop 8.0
  %v1617 = vmul.f32 %v1615, %v1616
  %v1618 = vsub.f32 %v1608, %v1617
  %v1619 = vmul.f32 %v1618, %v1618
  %v1620 = vsel %vm1174, %v1619, 0.0
  %v1621 = vrot.slane %v1620, 4
  %v1622 = vadd.f32 %v1620, %v1621
  %v1623 = vrot.slane %v1622, 2
  %v1624 = vadd.f32 %v1622, %v1623
  %v1625 = vrot.slane %v1624, 1
  %v1626 = vadd.f32 %v1624, %v1625
  %v1627 = vmul.f32 %v1626, %v1616
  %v1628 = vadd.f32 %v1627, 1e-05
  %v1629 = vrsqrt.pop %v1628
  %v1630 = vmul.f32 %v1618, %v1629
  %v1631 = vlaneseq
  %v1632 = vshrl.u32 %v1631, 7
  %v1633 = vsub.s32 0, %v1632
  %v1634 = vrot.slane %v1435, %v1633
  %v1635 = vmul.f32 %v1630, %v1634
  %v1636 = vlaneseq
  %v1637 = vshrl.u32 %v1636, 7
  %v1638 = vsub.s32 0, %v1637
  %v1639 = vrot.slane %v1436, %v1638
  %v1640 = vadd.f32 %v1635, %v1639
  %v1641 = vmax.f32 %v1640, 0.0
  %v1642 = vlaneseq
  %v1643 = vshrl.u32 %v1642, 7
  %v1644 = vsub.s32 0, %v1643
  %v1645 = vrot.slane %v1437, %v1644
  %v1647 = vsel %vm1174, %v1641, 0
  %1649 = vmatprep.subr.mxu0 0.0
  %1650 = vmatpush1.msra.mxu0 %v1430
  %1651 = vmatprep.subr.mxu0 0.0
  %1652 = vmatpush1.msra.mxu0 %v1431
  %1653 = vmatprep.subr.mxu0 0.0
  %1654 = vmatpush1.msra.mxu0 %v1432
  %1655 = vmatprep.subr.mxu0 0.0
  %1656 = vmatpush1.msra.mxu0 %v1433
  %1657 = vmatprep.subr.mxu0 0.0
  %1658 = vmatpush1.msra.mxu0 0.0
  %1659 = vmatprep.subr.mxu0 0.0
  %1660 = vmatpush1.msra.mxu0 0.0
  %1661 = vmatprep.subr.mxu0 0.0
  %1662 = vmatpush1.msra.mxu0 0.0
  %1663 = vmatprep.subr.mxu0 0.0
  %1664 = vmatpush1.msra.mxu0 0.0
  %1665 = vmatprep.subr.mxu0 0.0
  %1666 = vmatpush1.msra.mxu0 0.0
  %1667 = vmatprep.subr.mxu0 0.0
  %1668 = vmatpush1.msra.mxu0 0.0
  %1669 = vmatprep.subr.mxu0 0.0
  %1670 = vmatpush1.msra.mxu0 0.0
  %1671 = vmatprep.subr.mxu0 0.0
  %1672 = vmatpush1.msra.mxu0 0.0
  %1673 = vmatprep.subr.mxu0 0.0
  %1674 = vmatpush1.msra.mxu0 0.0
  %1675 = vmatprep.subr.mxu0 0.0
  %1676 = vmatpush1.msra.mxu0 0.0
  %1677 = vmatprep.subr.mxu0 0.0
  %1678 = vmatpush1.msra.mxu0 0.0
  %1679 = vmatprep.subr.mxu0 0.0
  %1680 = vmatpush1.msra.mxu0 0.0
  %1681 = vmatprep.subr.mxu0 0.0
  %1682 = vmatpush1.msra.mxu0 0.0
  %1683 = vmatprep.subr.mxu0 0.0
  %1684 = vmatpush1.msra.mxu0 0.0
  %1685 = vmatprep.subr.mxu0 0.0
  %1686 = vmatpush1.msra.mxu0 0.0
  %1687 = vmatprep.subr.mxu0 0.0
  %1688 = vmatpush1.msra.mxu0 0.0
  %1689 = vmatprep.subr.mxu0 0.0
  %1690 = vmatpush1.msra.mxu0 0.0
  %1691 = vmatprep.subr.mxu0 0.0
  %1692 = vmatpush1.msra.mxu0 0.0
  %1693 = vmatprep.subr.mxu0 0.0
  %1694 = vmatpush1.msra.mxu0 0.0
  %1695 = vmatprep.subr.mxu0 0.0
  %1696 = vmatpush1.msra.mxu0 0.0
  %1697 = vmatprep.subr.mxu0 0.0
  %1698 = vmatpush1.msra.mxu0 0.0
  %1699 = vmatprep.subr.mxu0 0.0
  %1700 = vmatpush1.msra.mxu0 0.0
  %1701 = vmatprep.subr.mxu0 0.0
  %1702 = vmatpush1.msra.mxu0 0.0
  %1703 = vmatprep.subr.mxu0 0.0
  %1704 = vmatpush1.msra.mxu0 0.0
  %1705 = vmatprep.subr.mxu0 0.0
  %1706 = vmatpush1.msra.mxu0 0.0
  %1707 = vmatprep.subr.mxu0 0.0
  %1708 = vmatpush1.msra.mxu0 0.0
  %1709 = vmatprep.subr.mxu0 0.0
  %1710 = vmatpush1.msra.mxu0 0.0
  %1711 = vmatprep.subr.mxu0 0.0
  %1712 = vmatpush1.msra.mxu0 0.0
  %1713 = vmatprep.mubr.f32.mxu0 0.0
  %1714 = vmatmul.mubr.f32.gmra.mrb[0].mxu0 %v1647
  %v1715 = vpop.f32.mrb[0].mxu0
  %v1716 = vadd.f32 %v1645, %v1715
  %v1717 = vpop.f32.mrb[0].mxu0
  %1718 = vdwg.mxu0
  %v1719 = vsel %vm1174, %v1716, 0.0
  %v1720 = vrot.slane %v1719, 4
  %v1721 = vadd.f32 %v1719, %v1720
  %v1722 = vrot.slane %v1721, 2
  %v1723 = vadd.f32 %v1721, %v1722
  %v1724 = vrot.slane %v1723, 1
  %v1725 = vadd.f32 %v1723, %v1724
  %v1726 = vmul.f32 %v1725, %v1616
  %v1727 = vsub.f32 %v1716, %v1726
  %v1728 = vmul.f32 %v1727, %v1727
  %v1729 = vsel %vm1174, %v1728, 0.0
  %v1730 = vrot.slane %v1729, 4
  %v1731 = vadd.f32 %v1729, %v1730
  %v1732 = vrot.slane %v1731, 2
  %v1733 = vadd.f32 %v1731, %v1732
  %v1734 = vrot.slane %v1733, 1
  %v1735 = vadd.f32 %v1733, %v1734
  %v1736 = vmul.f32 %v1735, %v1616
  %v1737 = vadd.f32 %v1736, 1e-05
  %v1738 = vrsqrt.pop %v1737
  %v1739 = vmul.f32 %v1727, %v1738
  %v1740 = vlaneseq
  %v1741 = vshrl.u32 %v1740, 7
  %v1742 = vsub.s32 0, %v1741
  %v1743 = vrot.slane %v1438, %v1742
  %v1744 = vmul.f32 %v1739, %v1743
  %v1745 = vlaneseq
  %v1746 = vshrl.u32 %v1745, 7
  %v1747 = vsub.s32 0, %v1746
  %v1748 = vrot.slane %v1439, %v1747
  %v1749 = vadd.f32 %v1744, %v1748
  %v1750 = vmax.f32 %v1749, 0.0
  %v1751 = vld [vmem:[%s5] sm:$0x3]
  %v1752 = vld [vmem:[%s5 + $0x8] sm:$0xff]
  %v1753 = vld [vmem:[%s5 + $0x10] sm:$0xff]
  %v1754 = vld [vmem:[%s5 + $0x18] sm:$0xff]
  %v1755 = vld [vmem:[%s5 + $0x20] sm:$0xff]
  %v1756 = vld [vmem:[%s5 + $0x28] sm:$0xff]
  %v1757 = vld [vmem:[%s5 + $0x30] sm:$0xff]
  %v1758 = vld [vmem:[%s5 + $0x38] sm:$0xff]
  %v1759 = vld [vmem:[%s5 + $0x40] sm:$0xff]
  %v1760 = vld [vmem:[%s5 + $0x48] sm:$0xff]
  %v1761 = vld [vmem:[%s5 + $0x50] sm:$0xff]
  %v1762 = vld [vmem:[%s5 + $0x58] sm:$0xff]
  %v1763 = vld [vmem:[%s5 + $0x60] sm:$0xff]
  %v1764 = vld [vmem:[%s6 + $0x9] sm:$0x1]
  %v1765 = vld [vmem:[%s6 + $0xa] sm:$0x1]
  %v1766 = vld [vmem:[%s6 + $0xb] sm:$0x1]
  %v1767 = vlaneseq
  %v1768 = vshrl.u32 %v1767, 7
  %v1769 = vsub.s32 0, %v1768
  %v1770 = vrot.slane %v1751, %v1769
  %v1771 = vmul.f32 %v76, %v1770
  %v1772 = vlaneseq
  %v1773 = vshrl.u32 %v1772, 7
  %v1774 = vsub.s32 1, %v1773
  %v1775 = vrot.slane %v1751, %v1774
  %v1776 = vmul.f32 %v120, %v1775
  %v1777 = vadd.f32 %v1771, %v1776
  %v1779 = vsel %vm1174, %v1750, 0
  %1781 = vmatprep.subr.mxu0 0.0
  %1782 = vmatpush1.msra.mxu0 %v1752
  %1783 = vmatprep.subr.mxu0 0.0
  %1784 = vmatpush1.msra.mxu0 %v1753
  %1785 = vmatprep.subr.mxu0 0.0
  %1786 = vmatpush1.msra.mxu0 %v1754
  %1787 = vmatprep.subr.mxu0 0.0
  %1788 = vmatpush1.msra.mxu0 %v1755
  %1789 = vmatprep.subr.mxu0 0.0
  %1790 = vmatpush1.msra.mxu0 0.0
  %1791 = vmatprep.subr.mxu0 0.0
  %1792 = vmatpush1.msra.mxu0 0.0
  %1793 = vmatprep.subr.mxu0 0.0
  %1794 = vmatpush1.msra.mxu0 0.0
  %1795 = vmatprep.subr.mxu0 0.0
  %1796 = vmatpush1.msra.mxu0 0.0
  %1797 = vmatprep.subr.mxu0 0.0
  %1798 = vmatpush1.msra.mxu0 0.0
  %1799 = vmatprep.subr.mxu0 0.0
  %1800 = vmatpush1.msra.mxu0 0.0
  %1801 = vmatprep.subr.mxu0 0.0
  %1802 = vmatpush1.msra.mxu0 0.0
  %1803 = vmatprep.subr.mxu0 0.0
  %1804 = vmatpush1.msra.mxu0 0.0
  %1805 = vmatprep.subr.mxu0 0.0
  %1806 = vmatpush1.msra.mxu0 0.0
  %1807 = vmatprep.subr.mxu0 0.0
  %1808 = vmatpush1.msra.mxu0 0.0
  %1809 = vmatprep.subr.mxu0 0.0
  %1810 = vmatpush1.msra.mxu0 0.0
  %1811 = vmatprep.subr.mxu0 0.0
  %1812 = vmatpush1.msra.mxu0 0.0
  %1813 = vmatprep.subr.mxu0 0.0
  %1814 = vmatpush1.msra.mxu0 0.0
  %1815 = vmatprep.subr.mxu0 0.0
  %1816 = vmatpush1.msra.mxu0 0.0
  %1817 = vmatprep.subr.mxu0 0.0
  %1818 = vmatpush1.msra.mxu0 0.0
  %1819 = vmatprep.subr.mxu0 0.0
  %1820 = vmatpush1.msra.mxu0 0.0
  %1821 = vmatprep.subr.mxu0 0.0
  %1822 = vmatpush1.msra.mxu0 0.0
  %1823 = vmatprep.subr.mxu0 0.0
  %1824 = vmatpush1.msra.mxu0 0.0
  %1825 = vmatprep.subr.mxu0 0.0
  %1826 = vmatpush1.msra.mxu0 0.0
  %1827 = vmatprep.subr.mxu0 0.0
  %1828 = vmatpush1.msra.mxu0 0.0
  %1829 = vmatprep.subr.mxu0 0.0
  %1830 = vmatpush1.msra.mxu0 0.0
  %1831 = vmatprep.subr.mxu0 0.0
  %1832 = vmatpush1.msra.mxu0 0.0
  %1833 = vmatprep.subr.mxu0 0.0
  %1834 = vmatpush1.msra.mxu0 0.0
  %1835 = vmatprep.subr.mxu0 0.0
  %1836 = vmatpush1.msra.mxu0 0.0
  %1837 = vmatprep.subr.mxu0 0.0
  %1838 = vmatpush1.msra.mxu0 0.0
  %1839 = vmatprep.subr.mxu0 0.0
  %1840 = vmatpush1.msra.mxu0 0.0
  %1841 = vmatprep.subr.mxu0 0.0
  %1842 = vmatpush1.msra.mxu0 0.0
  %1843 = vmatprep.subr.mxu0 0.0
  %1844 = vmatpush1.msra.mxu0 0.0
  %1845 = vmatprep.mubr.f32.mxu0 0.0
  %1846 = vmatmul.mubr.f32.gmra.mrb[0].mxu0 %v1779
  %v1847 = vpop.f32.mrb[0].mxu0
  %v1848 = vadd.f32 0.0, %v1847
  %v1849 = vpop.f32.mrb[0].mxu0
  %1850 = vdwg.mxu0
  %v1851 = vadd.f32 %v1777, %v1848
  %v1852 = vlaneseq
  %v1853 = vshrl.u32 %v1852, 7
  %v1854 = vsub.s32 0, %v1853
  %v1855 = vrot.slane %v1764, %v1854
  %v1856 = vadd.f32 %v1851, %v1855
  %v1857 = vxor.u32 %v1856, 2147483648
  %v1858 = vmul.f32 %v1857, 1.442695
  %v1859 = vpow.pop %v1858
  %v1860 = vadd.f32 %v1859, 1.0
  %v1861 = vrcp.pop %v1860
  %v1862 = vmul.f32 1.0, %v1861
  %v1863 = vtanh.pop %v1856
  %v1864 = vmul.f32 %v1862, 0.0
  %1866 = vrot.lane.b32.xlu0 %v1863, 64
  %v1867 = vpop.permute.xlu0 %1866
  %v1869 = vmul.f32 %v1862, %v1867
  %1871 = vrot.lane.b32.xlu0 %v1869, 32
  %v1872 = vpop.permute.xlu0 %1871
  %v1874 = vadd.f32 %v1864, %v1872
  %v1875 = vtanh.pop %v1874
  %1877 = vrot.lane.b32.xlu0 %v1875, 64
  %v1878 = vpop.permute.xlu0 %1877
  %v1880 = vmul.f32 %v1862, %v1878
  %v1881 = vlaneseq
  %v1882 = vshrl.u32 %v1881, 7
  %v1883 = vsub.s32 0, %v1882
  %v1884 = vrot.slane %v1765, %v1883
  %1886 = vrot.lane.b32.xlu0 %v1880, 32
  %v1887 = vpop.permute.xlu0 %1886
  %v1888 = vsel %vm1174, %v1887, 0
  %1890 = vmatprep.subr.mxu0 0.0
  %1891 = vmatpush1.msra.mxu0 %v1756
  %1892 = vmatprep.subr.mxu0 0.0
  %1893 = vmatpush1.msra.mxu0 %v1757
  %1894 = vmatprep.subr.mxu0 0.0
  %1895 = vmatpush1.msra.mxu0 %v1758
  %1896 = vmatprep.subr.mxu0 0.0
  %1897 = vmatpush1.msra.mxu0 %v1759
  %1898 = vmatprep.subr.mxu0 0.0
  %1899 = vmatpush1.msra.mxu0 0.0
  %1900 = vmatprep.subr.mxu0 0.0
  %1901 = vmatpush1.msra.mxu0 0.0
  %1902 = vmatprep.subr.mxu0 0.0
  %1903 = vmatpush1.msra.mxu0 0.0
  %1904 = vmatprep.subr.mxu0 0.0
  %1905 = vmatpush1.msra.mxu0 0.0
  %1906 = vmatprep.subr.mxu0 0.0
  %1907 = vmatpush1.msra.mxu0 0.0
  %1908 = vmatprep.subr.mxu0 0.0
  %1909 = vmatpush1.msra.mxu0 0.0
  %1910 = vmatprep.subr.mxu0 0.0
  %1911 = vmatpush1.msra.mxu0 0.0
  %1912 = vmatprep.subr.mxu0 0.0
  %1913 = vmatpush1.msra.mxu0 0.0
  %1914 = vmatprep.subr.mxu0 0.0
  %1915 = vmatpush1.msra.mxu0 0.0
  %1916 = vmatprep.subr.mxu0 0.0
  %1917 = vmatpush1.msra.mxu0 0.0
  %1918 = vmatprep.subr.mxu0 0.0
  %1919 = vmatpush1.msra.mxu0 0.0
  %1920 = vmatprep.subr.mxu0 0.0
  %1921 = vmatpush1.msra.mxu0 0.0
  %1922 = vmatprep.subr.mxu0 0.0
  %1923 = vmatpush1.msra.mxu0 0.0
  %1924 = vmatprep.subr.mxu0 0.0
  %1925 = vmatpush1.msra.mxu0 0.0
  %1926 = vmatprep.subr.mxu0 0.0
  %1927 = vmatpush1.msra.mxu0 0.0
  %1928 = vmatprep.subr.mxu0 0.0
  %1929 = vmatpush1.msra.mxu0 0.0
  %1930 = vmatprep.subr.mxu0 0.0
  %1931 = vmatpush1.msra.mxu0 0.0
  %1932 = vmatprep.subr.mxu0 0.0
  %1933 = vmatpush1.msra.mxu0 0.0
  %1934 = vmatprep.subr.mxu0 0.0
  %1935 = vmatpush1.msra.mxu0 0.0
  %1936 = vmatprep.subr.mxu0 0.0
  %1937 = vmatpush1.msra.mxu0 0.0
  %1938 = vmatprep.subr.mxu0 0.0
  %1939 = vmatpush1.msra.mxu0 0.0
  %1940 = vmatprep.subr.mxu0 0.0
  %1941 = vmatpush1.msra.mxu0 0.0
  %1942 = vmatprep.subr.mxu0 0.0
  %1943 = vmatpush1.msra.mxu0 0.0
  %1944 = vmatprep.subr.mxu0 0.0
  %1945 = vmatpush1.msra.mxu0 0.0
  %1946 = vmatprep.subr.mxu0 0.0
  %1947 = vmatpush1.msra.mxu0 0.0
  %1948 = vmatprep.subr.mxu0 0.0
  %1949 = vmatpush1.msra.mxu0 0.0
  %1950 = vmatprep.subr.mxu0 0.0
  %1951 = vmatpush1.msra.mxu0 0.0
  %1952 = vmatprep.subr.mxu0 0.0
  %1953 = vmatpush1.msra.mxu0 0.0
  %1954 = vmatprep.mubr.f32.mxu0 0.0
  %1955 = vmatmul.mubr.f32.gmra.mrb[0].mxu0 %v1888
  %v1956 = vpop.f32.mrb[0].mxu0
  %v1957 = vadd.f32 %v1884, %v1956
  %v1958 = vpop.f32.mrb[0].mxu0
  %1959 = vdwg.mxu0
  %v1960 = vxor.u32 %v1957, 2147483648
  %v1961 = vmul.f32 %v1960, 1.442695
  %v1962 = vpow.pop %v1961
  %v1963 = vadd.f32 %v1962, 1.0
  %v1964 = vrcp.pop %v1963
  %v1965 = vmul.f32 1.0, %v1964
  %v1966 = vtanh.pop %v1957
  %v1967 = vmul.f32 %v1965, %v1874
  %1969 = vrot.lane.b32.xlu0 %v1966, 64
  %v1970 = vpop.permute.xlu0 %1969
  %v1972 = vmul.f32 %v1965, %v1970
  %1974 = vrot.lane.b32.xlu0 %v1972, 32
  %v1975 = vpop.permute.xlu0 %1974
  %v1977 = vadd.f32 %v1967, %v1975
  %v1978 = vtanh.pop %v1977
  %1980 = vrot.lane.b32.xlu0 %v1978, 64
  %v1981 = vpop.permute.xlu0 %1980
  %v1983 = vmul.f32 %v1965, %v1981
  %1985 = vrot.lane.b32.xlu0 %v1983, 32
  %v1986 = vpop.permute.xlu0 %1985
  %v1987 = vsel %vm1174, %v1986, 0
  %1989 = vmatprep.subr.mxu0 0.0
  %1990 = vmatpush1.msra.mxu0 %v1756
  %1991 = vmatprep.subr.mxu0 0.0
  %1992 = vmatpush1.msra.mxu0 %v1757
  %1993 = vmatprep.subr.mxu0 0.0
  %1994 = vmatpush1.msra.mxu0 %v1758
  %1995 = vmatprep.subr.mxu0 0.0
  %1996 = vmatpush1.msra.mxu0 %v1759
  %1997 = vmatprep.subr.mxu0 0.0
  %1998 = vmatpush1.msra.mxu0 0.0
  %1999 = vmatprep.subr.mxu0 0.0
  %2000 = vmatpush1.msra.mxu0 0.0
  %2001 = vmatprep.subr.mxu0 0.0
  %2002 = vmatpush1.msra.mxu0 0.0
  %2003 = vmatprep.subr.mxu0 0.0
  %2004 = vmatpush1.msra.mxu0 0.0
  %2005 = vmatprep.subr.mxu0 0.0
  %2006 = vmatpush1.msra.mxu0 0.0
  %2007 = vmatprep.subr.mxu0 0.0
  %2008 = vmatpush1.msra.mxu0 0.0
  %2009 = vmatprep.subr.mxu0 0.0
  %2010 = vmatpush1.msra.mxu0 0.0
  %2011 = vmatprep.subr.mxu0 0.0
  %2012 = vmatpush1.msra.mxu0 0.0
  %2013 = vmatprep.subr.mxu0 0.0
  %2014 = vmatpush1.msra.mxu0 0.0
  %2015 = vmatprep.subr.mxu0 0.0
  %2016 = vmatpush1.msra.mxu0 0.0
  %2017 = vmatprep.subr.mxu0 0.0
  %2018 = vmatpush1.msra.mxu0 0.0
  %2019 = vmatprep.subr.mxu0 0.0
  %2020 = vmatpush1.msra.mxu0 0.0
  %2021 = vmatprep.subr.mxu0 0.0
  %2022 = vmatpush1.msra.mxu0 0.0
  %2023 = vmatprep.subr.mxu0 0.0
  %2024 = vmatpush1.msra.mxu0 0.0
  %2025 = vmatprep.subr.mxu0 0.0
  %2026 = vmatpush1.msra.mxu0 0.0
  %2027 = vmatprep.subr.mxu0 0.0
  %2028 = vmatpush1.msra.mxu0 0.0
  %2029 = vmatprep.subr.mxu0 0.0
  %2030 = vmatpush1.msra.mxu0 0.0
  %2031 = vmatprep.subr.mxu0 0.0
  %2032 = vmatpush1.msra.mxu0 0.0
  %2033 = vmatprep.subr.mxu0 0.0
  %2034 = vmatpush1.msra.mxu0 0.0
  %2035 = vmatprep.subr.mxu0 0.0
  %2036 = vmatpush1.msra.mxu0 0.0
  %2037 = vmatprep.subr.mxu0 0.0
  %2038 = vmatpush1.msra.mxu0 0.0
  %2039 = vmatprep.subr.mxu0 0.0
  %2040 = vmatpush1.msra.mxu0 0.0
  %2041 = vmatprep.subr.mxu0 0.0
  %2042 = vmatpush1.msra.mxu0 0.0
  %2043 = vmatprep.subr.mxu0 0.0
  %2044 = vmatpush1.msra.mxu0 0.0
  %2045 = vmatprep.subr.mxu0 0.0
  %2046 = vmatpush1.msra.mxu0 0.0
  %2047 = vmatprep.subr.mxu0 0.0
  %2048 = vmatpush1.msra.mxu0 0.0
  %2049 = vmatprep.subr.mxu0 0.0
  %2050 = vmatpush1.msra.mxu0 0.0
  %2051 = vmatprep.subr.mxu0 0.0
  %2052 = vmatpush1.msra.mxu0 0.0
  %2053 = vmatprep.mubr.f32.mxu0 0.0
  %2054 = vmatmul.mubr.f32.gmra.mrb[0].mxu0 %v1987
  %v2055 = vpop.f32.mrb[0].mxu0
  %v2056 = vadd.f32 %v1884, %v2055
  %v2057 = vpop.f32.mrb[0].mxu0
  %2058 = vdwg.mxu0
  %v2059 = vxor.u32 %v2056, 2147483648
  %v2060 = vmul.f32 %v2059, 1.442695
  %v2061 = vpow.pop %v2060
  %v2062 = vadd.f32 %v2061, 1.0
  %v2063 = vrcp.pop %v2062
  %v2064 = vmul.f32 1.0, %v2063
  %v2065 = vtanh.pop %v2056
  %v2066 = vmul.f32 %v2064, %v1977
  %2068 = vrot.lane.b32.xlu0 %v2065, 64
  %v2069 = vpop.permute.xlu0 %2068
  %v2071 = vmul.f32 %v2064, %v2069
  %2073 = vrot.lane.b32.xlu0 %v2071, 32
  %v2074 = vpop.permute.xlu0 %2073
  %v2076 = vadd.f32 %v2066, %v2074
  %v2077 = vtanh.pop %v2076
  %2079 = vrot.lane.b32.xlu0 %v2077, 64
  %v2080 = vpop.permute.xlu0 %2079
  %v2082 = vmul.f32 %v2064, %v2080
  %2084 = vrot.lane.b32.xlu0 %v2082, 32
  %v2085 = vpop.permute.xlu0 %2084
  %v2086 = vsel %vm1174, %v2085, 0
  %2088 = vmatprep.subr.mxu0 0.0
  %2089 = vmatpush1.msra.mxu0 %v1756
  %2090 = vmatprep.subr.mxu0 0.0
  %2091 = vmatpush1.msra.mxu0 %v1757
  %2092 = vmatprep.subr.mxu0 0.0
  %2093 = vmatpush1.msra.mxu0 %v1758
  %2094 = vmatprep.subr.mxu0 0.0
  %2095 = vmatpush1.msra.mxu0 %v1759
  %2096 = vmatprep.subr.mxu0 0.0
  %2097 = vmatpush1.msra.mxu0 0.0
  %2098 = vmatprep.subr.mxu0 0.0
  %2099 = vmatpush1.msra.mxu0 0.0
  %2100 = vmatprep.subr.mxu0 0.0
  %2101 = vmatpush1.msra.mxu0 0.0
  %2102 = vmatprep.subr.mxu0 0.0
  %2103 = vmatpush1.msra.mxu0 0.0
  %2104 = vmatprep.subr.mxu0 0.0
  %2105 = vmatpush1.msra.mxu0 0.0
  %2106 = vmatprep.subr.mxu0 0.0
  %2107 = vmatpush1.msra.mxu0 0.0
  %2108 = vmatprep.subr.mxu0 0.0
  %2109 = vmatpush1.msra.mxu0 0.0
  %2110 = vmatprep.subr.mxu0 0.0
  %2111 = vmatpush1.msra.mxu0 0.0
  %2112 = vmatprep.subr.mxu0 0.0
  %2113 = vmatpush1.msra.mxu0 0.0
  %2114 = vmatprep.subr.mxu0 0.0
  %2115 = vmatpush1.msra.mxu0 0.0
  %2116 = vmatprep.subr.mxu0 0.0
  %2117 = vmatpush1.msra.mxu0 0.0
  %2118 = vmatprep.subr.mxu0 0.0
  %2119 = vmatpush1.msra.mxu0 0.0
  %2120 = vmatprep.subr.mxu0 0.0
  %2121 = vmatpush1.msra.mxu0 0.0
  %2122 = vmatprep.subr.mxu0 0.0
  %2123 = vmatpush1.msra.mxu0 0.0
  %2124 = vmatprep.subr.mxu0 0.0
  %2125 = vmatpush1.msra.mxu0 0.0
  %2126 = vmatprep.subr.mxu0 0.0
  %2127 = vmatpush1.msra.mxu0 0.0
  %2128 = vmatprep.subr.mxu0 0.0
  %2129 = vmatpush1.msra.mxu0 0.0
  %2130 = vmatprep.subr.mxu0 0.0
  %2131 = vmatpush1.msra.mxu0 0.0
  %2132 = vmatprep.subr.mxu0 0.0
  %2133 = vmatpush1.msra.mxu0 0.0
  %2134 = vmatprep.subr.mxu0 0.0
  %2135 = vmatpush1.msra.mxu0 0.0
  %2136 = vmatprep.subr.mxu0 0.0
  %2137 = vmatpush1.msra.mxu0 0.0
  %2138 = vmatprep.subr.mxu0 0.0
  %2139 = vmatpush1.msra.mxu0 0.0
  %2140 = vmatprep.subr.mxu0 0.0
  %2141 = vmatpush1.msra.mxu0 0.0
  %2142 = vmatprep.subr.mxu0 0.0
  %2143 = vmatpush1.msra.mxu0 0.0
  %2144 = vmatprep.subr.mxu0 0.0
  %2145 = vmatpush1.msra.mxu0 0.0
  %2146 = vmatprep.subr.mxu0 0.0
  %2147 = vmatpush1.msra.mxu0 0.0
  %2148 = vmatprep.subr.mxu0 0.0
  %2149 = vmatpush1.msra.mxu0 0.0
  %2150 = vmatprep.subr.mxu0 0.0
  %2151 = vmatpush1.msra.mxu0 0.0
  %2152 = vmatprep.mubr.f32.mxu0 0.0
  %2153 = vmatmul.mubr.f32.gmra.mrb[0].mxu0 %v2086
  %v2154 = vpop.f32.mrb[0].mxu0
  %v2155 = vadd.f32 %v1884, %v2154
  %v2156 = vpop.f32.mrb[0].mxu0
  %2157 = vdwg.mxu0
  %v2158 = vxor.u32 %v2155, 2147483648
  %v2159 = vmul.f32 %v2158, 1.442695
  %v2160 = vpow.pop %v2159
  %v2161 = vadd.f32 %v2160, 1.0
  %v2162 = vrcp.pop %v2161
  %v2163 = vmul.f32 1.0, %v2162
  %v2164 = vtanh.pop %v2155
  %v2165 = vmul.f32 %v2163, %v2076
  %2167 = vrot.lane.b32.xlu0 %v2164, 64
  %v2168 = vpop.permute.xlu0 %2167
  %v2170 = vmul.f32 %v2163, %v2168
  %2172 = vrot.lane.b32.xlu0 %v2170, 32
  %v2173 = vpop.permute.xlu0 %2172
  %v2175 = vadd.f32 %v2165, %v2173
  %v2176 = vtanh.pop %v2175
  %2178 = vrot.lane.b32.xlu0 %v2176, 64
  %v2179 = vpop.permute.xlu0 %2178
  %v2181 = vmul.f32 %v2163, %v2179
  %v2182 = vlaneseq
  %v2183 = vshrl.u32 %v2182, 7
  %v2184 = vsub.s32 0, %v2183
  %v2185 = vrot.slane %v1766, %v2184
  %2187 = vrot.lane.b32.xlu0 %v2181, 32
  %v2188 = vpop.permute.xlu0 %2187
  %v2189 = vsel %vm1174, %v2188, 0
  %2191 = vmatprep.subr.mxu0 0.0
  %2192 = vmatpush1.msra.mxu0 %v1760
  %2193 = vmatprep.subr.mxu0 0.0
  %2194 = vmatpush1.msra.mxu0 %v1761
  %2195 = vmatprep.subr.mxu0 0.0
  %2196 = vmatpush1.msra.mxu0 %v1762
  %2197 = vmatprep.subr.mxu0 0.0
  %2198 = vmatpush1.msra.mxu0 %v1763
  %2199 = vmatprep.subr.mxu0 0.0
  %2200 = vmatpush1.msra.mxu0 0.0
  %2201 = vmatprep.subr.mxu0 0.0
  %2202 = vmatpush1.msra.mxu0 0.0
  %2203 = vmatprep.subr.mxu0 0.0
  %2204 = vmatpush1.msra.mxu0 0.0
  %2205 = vmatprep.subr.mxu0 0.0
  %2206 = vmatpush1.msra.mxu0 0.0
  %2207 = vmatprep.subr.mxu0 0.0
  %2208 = vmatpush1.msra.mxu0 0.0
  %2209 = vmatprep.subr.mxu0 0.0
  %2210 = vmatpush1.msra.mxu0 0.0
  %2211 = vmatprep.subr.mxu0 0.0
  %2212 = vmatpush1.msra.mxu0 0.0
  %2213 = vmatprep.subr.mxu0 0.0
  %2214 = vmatpush1.msra.mxu0 0.0
  %2215 = vmatprep.subr.mxu0 0.0
  %2216 = vmatpush1.msra.mxu0 0.0
  %2217 = vmatprep.subr.mxu0 0.0
  %2218 = vmatpush1.msra.mxu0 0.0
  %2219 = vmatprep.subr.mxu0 0.0
  %2220 = vmatpush1.msra.mxu0 0.0
  %2221 = vmatprep.subr.mxu0 0.0
  %2222 = vmatpush1.msra.mxu0 0.0
  %2223 = vmatprep.subr.mxu0 0.0
  %2224 = vmatpush1.msra.mxu0 0.0
  %2225 = vmatprep.subr.mxu0 0.0
  %2226 = vmatpush1.msra.mxu0 0.0
  %2227 = vmatprep.subr.mxu0 0.0
  %2228 = vmatpush1.msra.mxu0 0.0
  %2229 = vmatprep.subr.mxu0 0.0
  %2230 = vmatpush1.msra.mxu0 0.0
  %2231 = vmatprep.subr.mxu0 0.0
  %2232 = vmatpush1.msra.mxu0 0.0
  %2233 = vmatprep.subr.mxu0 0.0
  %2234 = vmatpush1.msra.mxu0 0.0
  %2235 = vmatprep.subr.mxu0 0.0
  %2236 = vmatpush1.msra.mxu0 0.0
  %2237 = vmatprep.subr.mxu0 0.0
  %2238 = vmatpush1.msra.mxu0 0.0
  %2239 = vmatprep.subr.mxu0 0.0
  %2240 = vmatpush1.msra.mxu0 0.0
  %2241 = vmatprep.subr.mxu0 0.0
  %2242 = vmatpush1.msra.mxu0 0.0
  %2243 = vmatprep.subr.mxu0 0.0
  %2244 = vmatpush1.msra.mxu0 0.0
  %2245 = vmatprep.subr.mxu0 0.0
  %2246 = vmatpush1.msra.mxu0 0.0
  %2247 = vmatprep.subr.mxu0 0.0
  %2248 = vmatpush1.msra.mxu0 0.0
  %2249 = vmatprep.subr.mxu0 0.0
  %2250 = vmatpush1.msra.mxu0 0.0
  %2251 = vmatprep.subr.mxu0 0.0
  %2252 = vmatpush1.msra.mxu0 0.0
  %2253 = vmatprep.subr.mxu0 0.0
  %2254 = vmatpush1.msra.mxu0 0.0
  %2255 = vmatprep.mubr.f32.mxu0 0.0
  %2256 = vmatmul.mubr.f32.gmra.mrb[0].mxu0 %v1888
  %v2257 = vpop.f32.mrb[0].mxu0
  %v2258 = vadd.f32 %v2185, %v2257
  %v2259 = vpop.f32.mrb[0].mxu0
  %2260 = vmatprep.mubr.f32.mxu0 0.0
  %2261 = vmatmul.mubr.f32.gmra.mrb[0].mxu0 %v1987
  %v2262 = vpop.f32.mrb[0].mxu0
  %v2263 = vadd.f32 %v2185, %v2262
  %v2264 = vpop.f32.mrb[0].mxu0
  %2265 = vmatprep.mubr.f32.mxu0 0.0
  %2266 = vmatmul.mubr.f32.gmra.mrb[0].mxu0 %v2086
  %v2267 = vpop.f32.mrb[0].mxu0
  %v2268 = vadd.f32 %v2185, %v2267
  %v2269 = vpop.f32.mrb[0].mxu0
  %2270 = vmatprep.mubr.f32.mxu0 0.0
  %2271 = vmatmul.mubr.f32.gmra.mrb[0].mxu0 %v2189
  %v2272 = vpop.f32.mrb[0].mxu0
  %v2273 = vadd.f32 %v2185, %v2272
  %v2274 = vpop.f32.mrb[0].mxu0
  %2275 = vdwg.mxu0
  %2276 = vst [vmem:[%s7] sm:$0xff] %v2258
  %2277 = vst [vmem:[%s7 + $0x8] sm:$0xff] %v2263
  %2278 = vst [vmem:[%s7 + $0x10] sm:$0xff] %v2268
  %2279 = vst [vmem:[%s7 + $0x18] sm:$0xff] %v2273
  // Predicated region
  $region30: #{generator_forward.1} parent=0 // pred_check
    _
  $region31: #{generator_forward.1} parent=0 // pred_check_branch
    %2281 = sbr.rel (0) target = $region33
  $region32: #{generator_forward.1} parent=0 // pred_region
    _
  $region33: #{generator_forward.1} parent=0 // pred_fallthru
    _
  // Predicated region
  $region34: #{generator_forward.1} parent=0 // pred_check
    _
  $region35: #{generator_forward.1} parent=0 // pred_check_branch
    %2283 = sbr.rel (0) target = $region37
  $region36: #{generator_forward.1} parent=0 // pred_region
    _
  $region37: #{generator_forward.1} parent=0 // pred_fallthru
    _

</llo_original>
